<compile_context>
chip_gen: v6e
topology: v6e:2x2x1
jax: 0.10.0
libtpu: 0.0.40
codegen_flags: <defaults>
</compile_context>

<pallas_src>
import functools

import jax
import jax.numpy as jnp
from jax import lax
from jax.experimental import pallas as pl
from jax.experimental.pallas import tpu as pltpu


def crf_kernel(logits_ref, tags_ref, mask_ref, trans_ref, transf_ref, out_ref,
               alpha_scr, score_scr, prevtag_scr):
    Tt, B, N = logits_ref.shape
    NN = transf_ref.shape[1]
    g = pl.program_id(0)
    n_g = pl.num_programs(0)

    # ---- loop-invariant transition prep (stable logsumexp-as-matmul) ----
    trans = trans_ref[...]                                   # (N, N)
    tmax = jnp.max(trans, axis=0, keepdims=True)             # (1, N)
    exp_t = jnp.exp(trans - tmax)                            # (N, N)
    trans_flat = transf_ref[...]                             # (1, N*N)
    tf3 = trans_flat.reshape(1, 1, NN)                       # (1, 1, N*N)

    # ---- init carried state on the first time block ----
    @pl.when(g == 0)
    def _init():
        alpha_scr[...] = logits_ref[0]                       # alpha_0 = emissions at t=0
        score_scr[...] = jnp.zeros_like(score_scr)
        # -1 sentinel: the (prev, cur) pair one-hot selects nothing at global t=0.
        prevtag_scr[...] = jnp.full(prevtag_scr.shape, -1, jnp.int32)

    # =====================================================================
    # Numerator (joint score): vectorized over the block, hoisted off the
    # sequential recursion (it has no dependence on alpha).
    # =====================================================================
    tags_blk = tags_ref[...]                                 # (Tt, B, 1) int32
    mask_blk = mask_ref[...]                                 # (Tt, B, 1) f32
    logits_blk = logits_ref[...]                             # (Tt, B, N) f32

    # emission terms: sum_t logits[t, b, tags[t, b]] * mask[t, b]
    lane_n = lax.broadcasted_iota(jnp.int32, (Tt, B, N), 2)
    onehot = (lane_n == tags_blk).astype(jnp.float32)        # (Tt, B, N)
    esc = jnp.sum(logits_blk * onehot, axis=2, keepdims=True)   # (Tt, B, 1)
    e_sum = jnp.sum(esc * mask_blk, axis=0)                  # (B, 1)

    # transition terms: sum_{s>=1} trans[tags[s-1], tags[s]] * mask[s]
    # flattened-pair one-hot over N*N lanes (no MXU, no tiled-dim reshapes).
    lane_nn = lax.broadcasted_iota(jnp.int32, (Tt - 1, B, NN), 2)
    pair_idx = tags_blk[:-1] * N + tags_blk[1:]              # (Tt-1, B, 1)
    pair_oh = (lane_nn == pair_idx).astype(jnp.float32)      # (Tt-1, B, NN)
    tsc = jnp.sum(pair_oh * tf3, axis=2, keepdims=True)      # (Tt-1, B, 1)
    t_sum = jnp.sum(tsc * mask_blk[1:], axis=0)              # (B, 1)

    # block-boundary transition: previous block's last tag -> this block's first tag
    lane_nn0 = lax.broadcasted_iota(jnp.int32, (B, NN), 1)
    pair_idx0 = prevtag_scr[...] * N + tags_blk[0]           # (B, 1)
    pair_oh0 = (lane_nn0 == pair_idx0).astype(jnp.float32)   # (B, NN)
    tsc0 = jnp.sum(pair_oh0 * trans_flat, axis=1, keepdims=True)  # (B, 1)
    t_sum = t_sum + tsc0 * mask_blk[0]

    score_scr[...] = score_scr[...] + e_sum + t_sum
    prevtag_scr[...] = tags_blk[Tt - 1]

    # =====================================================================
    # Denominator: forward-algorithm recursion. Only alpha-dependent work
    # is inside the serial (fully unrolled) loop.
    # =====================================================================
    def body(u, alpha):
        emit = logits_ref[u]                                 # (B, N)
        m_u = mask_ref[u]                                    # (B, 1)
        # global t == 0 is the init, not a recursion step -> force a no-op.
        m_u = jnp.where(jnp.logical_and(g == 0, u == 0), 0.0, m_u)
        amax = jnp.max(alpha, axis=1, keepdims=True)         # (B, 1)
        exp_a = jnp.exp(alpha - amax)                        # (B, N)
        s = jnp.dot(exp_a, exp_t, preferred_element_type=jnp.float32)   # MXU
        new_alpha = amax + tmax + jnp.log(s) + emit          # (B, N)
        return jnp.where(m_u > 0.0, new_alpha, alpha)

    alpha = lax.fori_loop(0, Tt, body, alpha_scr[...], unroll=True)
    alpha_scr[...] = alpha

    # ---- finalize on the last time block ----
    @pl.when(g == n_g - 1)
    def _finalize():
        amax = jnp.max(alpha, axis=1, keepdims=True)
        logz = amax + jnp.log(jnp.sum(jnp.exp(alpha - amax), axis=1, keepdims=True))
        out_ref[...] = jnp.sum(score_scr[...] - logz, axis=0, keepdims=True)   # (1, 1)


@functools.partial(jax.jit, static_argnames=("block_t",))
def crf_forward(inputs, tags, mask, transitions, *, block_t=32):
    """inputs: (B,T,N) float; tags: (B,T) int; mask: (B,T) 0/1; transitions: (N,N)."""
    B, T, N = inputs.shape
    # Time-major so the recursion indexes the leading (un-tiled) axis and every
    # per-step slice is (B, N) with the tag axis on lanes. The large one-hot /
    # lastpos tensors of the previous version are gone; tags stay int32.
    logits_t = jnp.transpose(inputs.astype(jnp.float32), (1, 0, 2))          # (T, B, N)
    tags_t = jnp.transpose(tags.astype(jnp.int32), (1, 0))[:, :, None]       # (T, B, 1)
    mask_t = jnp.transpose(mask.astype(jnp.float32), (1, 0))[:, :, None]     # (T, B, 1)

    bt = min(block_t, max(T, 2))
    n_blocks = -(-T // bt)
    T_pad = n_blocks * bt
    pad = T_pad - T
    if pad:
        # padded steps have mask=0: the recursion freezes and score terms vanish.
        logits_t = jnp.pad(logits_t, ((0, pad), (0, 0), (0, 0)))
        tags_t = jnp.pad(tags_t, ((0, pad), (0, 0), (0, 0)))
        mask_t = jnp.pad(mask_t, ((0, pad), (0, 0), (0, 0)))

    trans = transitions.astype(jnp.float32)
    trans_flat = trans.reshape(1, N * N)

    out = pl.pallas_call(
        crf_kernel,
        out_shape=jax.ShapeDtypeStruct((1, 1), jnp.float32),
        grid_spec=pltpu.PrefetchScalarGridSpec(
            num_scalar_prefetch=0,
            grid=(n_blocks,),
            in_specs=[
                pl.BlockSpec((bt, B, N), lambda g: (g, 0, 0)),   # logits
                pl.BlockSpec((bt, B, 1), lambda g: (g, 0, 0)),   # tags (int32)
                pl.BlockSpec((bt, B, 1), lambda g: (g, 0, 0)),   # mask
                pl.BlockSpec((N, N), lambda g: (0, 0)),          # transitions
                pl.BlockSpec((1, N * N), lambda g: (0, 0)),      # transitions, flat
            ],
            out_specs=pl.BlockSpec((1, 1), lambda g: (0, 0)),
            scratch_shapes=[
                pltpu.VMEM((B, N), jnp.float32),   # alpha carry
                pltpu.VMEM((B, 1), jnp.float32),   # joint-score accumulator
                pltpu.VMEM((B, 1), jnp.int32),     # previous-step tag carry
            ],
        ),
        compiler_params=pltpu.CompilerParams(
            dimension_semantics=("arbitrary",)),
    )(logits_t, tags_t, mask_t, trans, trans_flat)
    return out[0, 0]


def crf_forward_ref(inputs, tags, mask, trans):
    """Pure-JAX reference mirroring the PyTorch code literally (f32 throughout)."""
    B, T, N = inputs.shape
    logits = jnp.transpose(inputs.astype(jnp.float32), (1, 0, 2))
    maskf = jnp.transpose(mask.astype(jnp.float32), (1, 0))
    tags_t = jnp.transpose(tags, (1, 0))
    # _input_likelihood
    alpha = logits[0]
    for t in range(1, T):
        inner = alpha[:, :, None] + logits[t][:, None, :] + trans[None, :, :]
        new_alpha = jax.scipy.special.logsumexp(inner, axis=1)
        alpha = new_alpha * maskf[t][:, None] + alpha * (1.0 - maskf[t])[:, None]
    log_den = jax.scipy.special.logsumexp(alpha, axis=-1)
    # _joint_likelihood
    score = jnp.zeros((B,), jnp.float32)
    for t in range(T - 1):
        cur, nxt = tags_t[t], tags_t[t + 1]
        tsc = trans[cur, nxt]
        esc = jnp.take_along_axis(logits[t], cur[:, None], axis=1)[:, 0]
        score = score + tsc * maskf[t + 1] + esc * maskf[t]
    last_idx = jnp.sum(maskf, axis=0).astype(jnp.int32) - 1
    last_tags = tags_t[last_idx, jnp.arange(B)]
    last_inp = jnp.take_along_axis(logits[T - 1], last_tags[:, None], axis=1)[:, 0]
    score = score + last_inp * maskf[T - 1]
    return jnp.sum(score - log_den)


# TODO(synk): viterbi_tags (constrained decode with variable-length Python loops /
# list outputs) has no clean single-kernel Pallas equivalent and is not implemented.

if __name__ == "__main__":
    key = jax.random.PRNGKey(0)

    def run_case(B, T, N, lengths, block_t):
        k_in, k_tag, k_tr = jax.random.split(jax.random.fold_in(key, T), 3)
        inputs = jax.random.normal(k_in, (B, T, N), dtype=jnp.float32)
        tags = jax.random.randint(k_tag, (B, T), 0, N, dtype=jnp.int32)
        mask = (jnp.arange(T)[None, :] < jnp.array(lengths)[:, None]).astype(jnp.int32)
        # CRF parameter init: xavier_normal_(transitions): std = sqrt(2/(N+N))
        trans_std = (2.0 / (N + N)) ** 0.5
        transitions = trans_std * jax.random.normal(k_tr, (N, N), dtype=jnp.float32)

        out = crf_forward(inputs, tags, mask, transitions, block_t=block_t)
        out = jax.block_until_ready(out)
        ref = crf_forward_ref(inputs, tags, mask, transitions)
        # Tolerance covers the bf16-pass MXU precision of the recursion matmul
        # (default precision per the perf review), which compounds ~1e-3
        # relative error over the T-step recursion.
        assert jnp.allclose(out, ref, rtol=1e-2, atol=5e-2), (out, ref)

    # small case from the module spec (single time block)
    run_case(B=2, T=8, N=5, lengths=[8, 5], block_t=32)
    # multi-block case (exercises the time tiling, carries and padding path)
    run_case(B=3, T=40, N=6, lengths=[40, 23, 1], block_t=16)

    print("KERNEL_OK")
</pallas_src>

<mosaic_0001>
module attributes {stable_mosaic.version = 11 : i64} {
  func.func @crf_kernel(%arg0: i32, %arg1: memref<8x2x5xf32, #tpu.memory_space<vmem>>, %arg2: memref<8x2x1xi32, #tpu.memory_space<vmem>>, %arg3: memref<8x2x1xf32, #tpu.memory_space<vmem>>, %arg4: memref<5x5xf32, #tpu.memory_space<vmem>>, %arg5: memref<1x25xf32, #tpu.memory_space<vmem>>, %arg6: memref<1x1xf32, #tpu.memory_space<vmem>>, %arg7: memref<2x5xf32, #tpu.memory_space<vmem>>, %arg8: memref<2x1xf32, #tpu.memory_space<vmem>>, %arg9: memref<2x1xi32, #tpu.memory_space<vmem>>) attributes {dimension_semantics = [#tpu.dimension_semantics<arbitrary>], iteration_bounds = array<i64: 1>, scalar_prefetch = 0 : i64, scratch_operands = 3 : i64, tpu.core_type = #tpu.core_type<tc>, window_params = [{transform_indices = @transform_0, window_bounds = array<i64: 8, 2, 5>}, {transform_indices = @transform_1, window_bounds = array<i64: 8, 2, 1>}, {transform_indices = @transform_2, window_bounds = array<i64: 8, 2, 1>}, {pipeline_mode = #tpu.pipeline_mode<synchronous>, transform_indices = @transform_3, window_bounds = array<i64: 5, 5>}, {pipeline_mode = #tpu.pipeline_mode<synchronous>, transform_indices = @transform_4, window_bounds = array<i64: 1, 25>}, {pipeline_mode = #tpu.pipeline_mode<synchronous>, transform_indices = @transform_5, window_bounds = array<i64: 1, 1>}]} {
    %c0 = arith.constant 0 : index
    %c0_0 = arith.constant 0 : index
    %0 = vector.load %arg4[%c0, %c0_0] : memref<5x5xf32, #tpu.memory_space<vmem>>, vector<5x5xf32>
    %cst = arith.constant dense<0xFF800000> : vector<5xf32>
    %1 = vector.multi_reduction <maximumf>, %0, %cst [0] : vector<5x5xf32> to vector<5xf32>
    %2 = vector.shape_cast %1 : vector<5xf32> to vector<1x5xf32>
    %3 = vector.broadcast %2 : vector<1x5xf32> to vector<5x5xf32>
    %4 = arith.subf %0, %3 : vector<5x5xf32>
    %5 = math.exp %4 : vector<5x5xf32>
    %c0_1 = arith.constant 0 : index
    %c0_2 = arith.constant 0 : index
    %6 = vector.load %arg5[%c0_1, %c0_2] : memref<1x25xf32, #tpu.memory_space<vmem>>, vector<1x25xf32>
    %7 = vector.shape_cast %6 : vector<1x25xf32> to vector<1x1x25xf32>
    %c0_i32 = arith.constant 0 : i32
    %8 = arith.cmpi eq, %arg0, %c0_i32 : i32
    %9 = arith.extui %8 : i1 to i32
    %c0_i32_3 = arith.constant 0 : i32
    %10 = arith.cmpi ne, %9, %c0_i32_3 : i32
    scf.if %10 {
      %c0_115 = arith.constant 0 : index
      %c0_116 = arith.constant 0 : index
      %c0_117 = arith.constant 0 : index
      %296 = vector.load %arg1[%c0_115, %c0_116, %c0_117] : memref<8x2x5xf32, #tpu.memory_space<vmem>>, vector<1x2x5xf32>
      %297 = vector.shape_cast %296 : vector<1x2x5xf32> to vector<2x5xf32>
      %c0_118 = arith.constant 0 : index
      %c0_119 = arith.constant 0 : index
      %298 = vector.load %arg7[%c0_118, %c0_119] : memref<2x5xf32, #tpu.memory_space<vmem>>, vector<2x5xf32>
      tpu.vector_store %arg7[%c0_118, %c0_119], %297 {strides = array<i32>} : memref<2x5xf32, #tpu.memory_space<vmem>>, vector<2x5xf32>,
      %cst_120 = arith.constant 0.000000e+00 : f32
      %299 = vector.broadcast %cst_120 : f32 to vector<2x1xf32>
      %c0_121 = arith.constant 0 : index
      %c0_122 = arith.constant 0 : index
      %300 = vector.load %arg8[%c0_121, %c0_122] : memref<2x1xf32, #tpu.memory_space<vmem>>, vector<2x1xf32>
      tpu.vector_store %arg8[%c0_121, %c0_122], %299 {strides = array<i32>} : memref<2x1xf32, #tpu.memory_space<vmem>>, vector<2x1xf32>,
      %c-1_i32 = arith.constant -1 : i32
      %301 = vector.broadcast %c-1_i32 : i32 to vector<2x1xi32>
      %c0_123 = arith.constant 0 : index
      %c0_124 = arith.constant 0 : index
      %302 = vector.load %arg9[%c0_123, %c0_124] : memref<2x1xi32, #tpu.memory_space<vmem>>, vector<2x1xi32>
      tpu.vector_store %arg9[%c0_123, %c0_124], %301 {strides = array<i32>} : memref<2x1xi32, #tpu.memory_space<vmem>>, vector<2x1xi32>,
    } else {
    }
    %c0_4 = arith.constant 0 : index
    %c0_5 = arith.constant 0 : index
    %c0_6 = arith.constant 0 : index
    %11 = vector.load %arg2[%c0_4, %c0_5, %c0_6] : memref<8x2x1xi32, #tpu.memory_space<vmem>>, vector<8x2x1xi32>
    %c0_7 = arith.constant 0 : index
    %c0_8 = arith.constant 0 : index
    %c0_9 = arith.constant 0 : index
    %12 = vector.load %arg3[%c0_7, %c0_8, %c0_9] : memref<8x2x1xf32, #tpu.memory_space<vmem>>, vector<8x2x1xf32>
    %c0_10 = arith.constant 0 : index
    %c0_11 = arith.constant 0 : index
    %c0_12 = arith.constant 0 : index
    %13 = vector.load %arg1[%c0_10, %c0_11, %c0_12] : memref<8x2x5xf32, #tpu.memory_space<vmem>>, vector<8x2x5xf32>
    %14 = tpu.iota {dimensions = array<i32: 2>} : vector<8x2x5xi32>
    %15 = vector.broadcast %11 : vector<8x2x1xi32> to vector<8x2x5xi32>
    %16 = arith.cmpi eq, %14, %15 : vector<8x2x5xi32>
    %17 = arith.extui %16 : vector<8x2x5xi1> to vector<8x2x5xi32>
    %18 = arith.sitofp %17 : vector<8x2x5xi32> to vector<8x2x5xf32>
    %19 = arith.mulf %13, %18 : vector<8x2x5xf32>
    %cst_13 = arith.constant dense<0.000000e+00> : vector<8x2xf32>
    %20 = vector.multi_reduction <add>, %19, %cst_13 [2] : vector<8x2x5xf32> to vector<8x2xf32>
    %21 = vector.shape_cast %20 : vector<8x2xf32> to vector<8x2x1xf32>
    %22 = arith.mulf %21, %12 : vector<8x2x1xf32>
    %cst_14 = arith.constant dense<0.000000e+00> : vector<2x1xf32>
    %23 = vector.multi_reduction <add>, %22, %cst_14 [0] : vector<8x2x1xf32> to vector<2x1xf32>
    %24 = tpu.iota {dimensions = array<i32: 2>} : vector<7x2x25xi32>
    %25 = vector.extract_strided_slice %11 {offsets = [0, 0, 0], sizes = [7, 2, 1], strides = [1, 1, 1]} : vector<8x2x1xi32> to vector<7x2x1xi32>
    %c5_i32 = arith.constant 5 : i32
    %26 = vector.broadcast %c5_i32 : i32 to vector<7x2x1xi32>
    %27 = arith.muli %25, %26 : vector<7x2x1xi32>
    %28 = vector.extract_strided_slice %11 {offsets = [1, 0, 0], sizes = [7, 2, 1], strides = [1, 1, 1]} : vector<8x2x1xi32> to vector<7x2x1xi32>
    %29 = arith.addi %27, %28 : vector<7x2x1xi32>
    %30 = vector.broadcast %29 : vector<7x2x1xi32> to vector<7x2x25xi32>
    %31 = arith.cmpi eq, %24, %30 : vector<7x2x25xi32>
    %32 = arith.extui %31 : vector<7x2x25xi1> to vector<7x2x25xi32>
    %33 = arith.sitofp %32 : vector<7x2x25xi32> to vector<7x2x25xf32>
    %34 = vector.broadcast %7 : vector<1x1x25xf32> to vector<7x2x25xf32>
    %35 = arith.mulf %33, %34 : vector<7x2x25xf32>
    %cst_15 = arith.constant dense<0.000000e+00> : vector<7x2xf32>
    %36 = vector.multi_reduction <add>, %35, %cst_15 [2] : vector<7x2x25xf32> to vector<7x2xf32>
    %37 = vector.shape_cast %36 : vector<7x2xf32> to vector<7x2x1xf32>
    %38 = vector.extract_strided_slice %12 {offsets = [1, 0, 0], sizes = [7, 2, 1], strides = [1, 1, 1]} : vector<8x2x1xf32> to vector<7x2x1xf32>
    %39 = arith.mulf %37, %38 : vector<7x2x1xf32>
    %cst_16 = arith.constant dense<0.000000e+00> : vector<2x1xf32>
    %40 = vector.multi_reduction <add>, %39, %cst_16 [0] : vector<7x2x1xf32> to vector<2x1xf32>
    %41 = tpu.iota {dimensions = array<i32: 1>} : vector<2x25xi32>
    %c0_17 = arith.constant 0 : index
    %c0_18 = arith.constant 0 : index
    %42 = vector.load %arg9[%c0_17, %c0_18] : memref<2x1xi32, #tpu.memory_space<vmem>>, vector<2x1xi32>
    %c5_i32_19 = arith.constant 5 : i32
    %43 = vector.broadcast %c5_i32_19 : i32 to vector<2x1xi32>
    %44 = arith.muli %42, %43 : vector<2x1xi32>
    %45 = vector.extract_strided_slice %11 {offsets = [0, 0, 0], sizes = [1, 2, 1], strides = [1, 1, 1]} : vector<8x2x1xi32> to vector<1x2x1xi32>
    %46 = vector.shape_cast %45 : vector<1x2x1xi32> to vector<2x1xi32>
    %47 = arith.addi %44, %46 : vector<2x1xi32>
    %48 = vector.broadcast %47 : vector<2x1xi32> to vector<2x25xi32>
    %49 = arith.cmpi eq, %41, %48 : vector<2x25xi32>
    %50 = arith.extui %49 : vector<2x25xi1> to vector<2x25xi32>
    %51 = arith.sitofp %50 : vector<2x25xi32> to vector<2x25xf32>
    %52 = vector.broadcast %6 : vector<1x25xf32> to vector<2x25xf32>
    %53 = arith.mulf %51, %52 : vector<2x25xf32>
    %cst_20 = arith.constant dense<0.000000e+00> : vector<2xf32>
    %54 = vector.multi_reduction <add>, %53, %cst_20 [1] : vector<2x25xf32> to vector<2xf32>
    %55 = vector.shape_cast %54 : vector<2xf32> to vector<2x1xf32>
    %56 = vector.extract_strided_slice %12 {offsets = [0, 0, 0], sizes = [1, 2, 1], strides = [1, 1, 1]} : vector<8x2x1xf32> to vector<1x2x1xf32>
    %57 = vector.shape_cast %56 : vector<1x2x1xf32> to vector<2x1xf32>
    %58 = arith.mulf %55, %57 : vector<2x1xf32>
    %59 = arith.addf %40, %58 : vector<2x1xf32>
    %c0_21 = arith.constant 0 : index
    %c0_22 = arith.constant 0 : index
    %60 = vector.load %arg8[%c0_21, %c0_22] : memref<2x1xf32, #tpu.memory_space<vmem>>, vector<2x1xf32>
    %61 = arith.addf %60, %23 : vector<2x1xf32>
    %62 = arith.addf %61, %59 : vector<2x1xf32>
    %c0_23 = arith.constant 0 : index
    %c0_24 = arith.constant 0 : index
    %63 = vector.load %arg8[%c0_23, %c0_24] : memref<2x1xf32, #tpu.memory_space<vmem>>, vector<2x1xf32>
    tpu.vector_store %arg8[%c0_23, %c0_24], %62 {strides = array<i32>} : memref<2x1xf32, #tpu.memory_space<vmem>>, vector<2x1xf32>,
    %64 = vector.extract_strided_slice %11 {offsets = [7, 0, 0], sizes = [1, 2, 1], strides = [1, 1, 1]} : vector<8x2x1xi32> to vector<1x2x1xi32>
    %65 = vector.shape_cast %64 : vector<1x2x1xi32> to vector<2x1xi32>
    %c0_25 = arith.constant 0 : index
    %c0_26 = arith.constant 0 : index
    %66 = vector.load %arg9[%c0_25, %c0_26] : memref<2x1xi32, #tpu.memory_space<vmem>>, vector<2x1xi32>
    tpu.vector_store %arg9[%c0_25, %c0_26], %65 {strides = array<i32>} : memref<2x1xi32, #tpu.memory_space<vmem>>, vector<2x1xi32>,
    %c0_27 = arith.constant 0 : index
    %c0_28 = arith.constant 0 : index
    %67 = vector.load %arg7[%c0_27, %c0_28] : memref<2x5xf32, #tpu.memory_space<vmem>>, vector<2x5xf32>
    %c0_i32_29 = arith.constant 0 : i32
    %68 = arith.index_cast %c0_i32_29 : i32 to index
    %c0_30 = arith.constant 0 : index
    %c0_31 = arith.constant 0 : index
    %69 = vector.load %arg1[%68, %c0_30, %c0_31] : memref<8x2x5xf32, #tpu.memory_space<vmem>>, vector<1x2x5xf32>
    %70 = vector.shape_cast %69 : vector<1x2x5xf32> to vector<2x5xf32>
    %71 = arith.index_cast %c0_i32_29 : i32 to index
    %c0_32 = arith.constant 0 : index
    %c0_33 = arith.constant 0 : index
    %72 = vector.load %arg3[%71, %c0_32, %c0_33] : memref<8x2x1xf32, #tpu.memory_space<vmem>>, vector<1x2x1xf32>
    %73 = vector.shape_cast %72 : vector<1x2x1xf32> to vector<2x1xf32>
    %c0_i32_34 = arith.constant 0 : i32
    %74 = arith.cmpi eq, %arg0, %c0_i32_34 : i32
    %c0_i32_35 = arith.constant 0 : i32
    %75 = arith.cmpi eq, %c0_i32_29, %c0_i32_35 : i32
    %76 = arith.andi %74, %75 : i1
    %cst_36 = arith.constant 0.000000e+00 : f32
    %77 = vector.broadcast %cst_36 : f32 to vector<2x1xf32>
    %78 = arith.select %76, %77, %73 : vector<2x1xf32>
    %cst_37 = arith.constant dense<0xFF800000> : vector<2xf32>
    %79 = vector.multi_reduction <maximumf>, %67, %cst_37 [1] : vector<2x5xf32> to vector<2xf32>
    %80 = vector.shape_cast %79 : vector<2xf32> to vector<2x1xf32>
    %81 = vector.broadcast %80 : vector<2x1xf32> to vector<2x5xf32>
    %82 = arith.subf %67, %81 : vector<2x5xf32>
    %83 = math.exp %82 : vector<2x5xf32>
    %cst_38 = arith.constant dense<0.000000e+00> : vector<2x5xf32>
    %84 = tpu.matmul %83, %5, %cst_38 {dimension_numbers = #tpu.dot_dimension_numbers<[1], [0], [0], [1], [0, 0, 1, 1], [], []>} : vector<2x5xf32>, vector<5x5xf32>, vector<2x5xf32> -> vector<2x5xf32>
    %85 = vector.broadcast %80 : vector<2x1xf32> to vector<2x5xf32>
    %86 = vector.broadcast %2 : vector<1x5xf32> to vector<2x5xf32>
    %87 = arith.addf %85, %86 : vector<2x5xf32>
    %88 = math.log %84 : vector<2x5xf32>
    %89 = arith.addf %87, %88 : vector<2x5xf32>
    %90 = arith.addf %89, %70 : vector<2x5xf32>
    %cst_39 = arith.constant 0.000000e+00 : f32
    %91 = vector.broadcast %cst_39 : f32 to vector<2x1xf32>
    %92 = arith.cmpf ogt, %78, %91 : vector<2x1xf32>
    %93 = vector.shape_cast %92 : vector<2x1xi1> to vector<2x1xi1>
    %94 = vector.broadcast %93 : vector<2x1xi1> to vector<2x5xi1>
    %95 = arith.select %94, %90, %67 : vector<2x5xi1>, vector<2x5xf32>
    %c1_i32 = arith.constant 1 : i32
    %96 = arith.index_cast %c1_i32 : i32 to index
    %c0_40 = arith.constant 0 : index
    %c0_41 = arith.constant 0 : index
    %97 = vector.load %arg1[%96, %c0_40, %c0_41] : memref<8x2x5xf32, #tpu.memory_space<vmem>>, vector<1x2x5xf32>
    %98 = vector.shape_cast %97 : vector<1x2x5xf32> to vector<2x5xf32>
    %99 = arith.index_cast %c1_i32 : i32 to index
    %c0_42 = arith.constant 0 : index
    %c0_43 = arith.constant 0 : index
    %100 = vector.load %arg3[%99, %c0_42, %c0_43] : memref<8x2x1xf32, #tpu.memory_space<vmem>>, vector<1x2x1xf32>
    %101 = vector.shape_cast %100 : vector<1x2x1xf32> to vector<2x1xf32>
    %c0_i32_44 = arith.constant 0 : i32
    %102 = arith.cmpi eq, %arg0, %c0_i32_44 : i32
    %c0_i32_45 = arith.constant 0 : i32
    %103 = arith.cmpi eq, %c1_i32, %c0_i32_45 : i32
    %104 = arith.andi %102, %103 : i1
    %cst_46 = arith.constant 0.000000e+00 : f32
    %105 = vector.broadcast %cst_46 : f32 to vector<2x1xf32>
    %106 = arith.select %104, %105, %101 : vector<2x1xf32>
    %cst_47 = arith.constant dense<0xFF800000> : vector<2xf32>
    %107 = vector.multi_reduction <maximumf>, %95, %cst_47 [1] : vector<2x5xf32> to vector<2xf32>
    %108 = vector.shape_cast %107 : vector<2xf32> to vector<2x1xf32>
    %109 = vector.broadcast %108 : vector<2x1xf32> to vector<2x5xf32>
    %110 = arith.subf %95, %109 : vector<2x5xf32>
    %111 = math.exp %110 : vector<2x5xf32>
    %cst_48 = arith.constant dense<0.000000e+00> : vector<2x5xf32>
    %112 = tpu.matmul %111, %5, %cst_48 {dimension_numbers = #tpu.dot_dimension_numbers<[1], [0], [0], [1], [0, 0, 1, 1], [], []>} : vector<2x5xf32>, vector<5x5xf32>, vector<2x5xf32> -> vector<2x5xf32>
    %113 = vector.broadcast %108 : vector<2x1xf32> to vector<2x5xf32>
    %114 = vector.broadcast %2 : vector<1x5xf32> to vector<2x5xf32>
    %115 = arith.addf %113, %114 : vector<2x5xf32>
    %116 = math.log %112 : vector<2x5xf32>
    %117 = arith.addf %115, %116 : vector<2x5xf32>
    %118 = arith.addf %117, %98 : vector<2x5xf32>
    %cst_49 = arith.constant 0.000000e+00 : f32
    %119 = vector.broadcast %cst_49 : f32 to vector<2x1xf32>
    %120 = arith.cmpf ogt, %106, %119 : vector<2x1xf32>
    %121 = vector.shape_cast %120 : vector<2x1xi1> to vector<2x1xi1>
    %122 = vector.broadcast %121 : vector<2x1xi1> to vector<2x5xi1>
    %123 = arith.select %122, %118, %95 : vector<2x5xi1>, vector<2x5xf32>
    %c2_i32 = arith.constant 2 : i32
    %124 = arith.index_cast %c2_i32 : i32 to index
    %c0_50 = arith.constant 0 : index
    %c0_51 = arith.constant 0 : index
    %125 = vector.load %arg1[%124, %c0_50, %c0_51] : memref<8x2x5xf32, #tpu.memory_space<vmem>>, vector<1x2x5xf32>
    %126 = vector.shape_cast %125 : vector<1x2x5xf32> to vector<2x5xf32>
    %127 = arith.index_cast %c2_i32 : i32 to index
    %c0_52 = arith.constant 0 : index
    %c0_53 = arith.constant 0 : index
    %128 = vector.load %arg3[%127, %c0_52, %c0_53] : memref<8x2x1xf32, #tpu.memory_space<vmem>>, vector<1x2x1xf32>
    %129 = vector.shape_cast %128 : vector<1x2x1xf32> to vector<2x1xf32>
    %c0_i32_54 = arith.constant 0 : i32
    %130 = arith.cmpi eq, %arg0, %c0_i32_54 : i32
    %c0_i32_55 = arith.constant 0 : i32
    %131 = arith.cmpi eq, %c2_i32, %c0_i32_55 : i32
    %132 = arith.andi %130, %131 : i1
    %cst_56 = arith.constant 0.000000e+00 : f32
    %133 = vector.broadcast %cst_56 : f32 to vector<2x1xf32>
    %134 = arith.select %132, %133, %129 : vector<2x1xf32>
    %cst_57 = arith.constant dense<0xFF800000> : vector<2xf32>
    %135 = vector.multi_reduction <maximumf>, %123, %cst_57 [1] : vector<2x5xf32> to vector<2xf32>
    %136 = vector.shape_cast %135 : vector<2xf32> to vector<2x1xf32>
    %137 = vector.broadcast %136 : vector<2x1xf32> to vector<2x5xf32>
    %138 = arith.subf %123, %137 : vector<2x5xf32>
    %139 = math.exp %138 : vector<2x5xf32>
    %cst_58 = arith.constant dense<0.000000e+00> : vector<2x5xf32>
    %140 = tpu.matmul %139, %5, %cst_58 {dimension_numbers = #tpu.dot_dimension_numbers<[1], [0], [0], [1], [0, 0, 1, 1], [], []>} : vector<2x5xf32>, vector<5x5xf32>, vector<2x5xf32> -> vector<2x5xf32>
    %141 = vector.broadcast %136 : vector<2x1xf32> to vector<2x5xf32>
    %142 = vector.broadcast %2 : vector<1x5xf32> to vector<2x5xf32>
    %143 = arith.addf %141, %142 : vector<2x5xf32>
    %144 = math.log %140 : vector<2x5xf32>
    %145 = arith.addf %143, %144 : vector<2x5xf32>
    %146 = arith.addf %145, %126 : vector<2x5xf32>
    %cst_59 = arith.constant 0.000000e+00 : f32
    %147 = vector.broadcast %cst_59 : f32 to vector<2x1xf32>
    %148 = arith.cmpf ogt, %134, %147 : vector<2x1xf32>
    %149 = vector.shape_cast %148 : vector<2x1xi1> to vector<2x1xi1>
    %150 = vector.broadcast %149 : vector<2x1xi1> to vector<2x5xi1>
    %151 = arith.select %150, %146, %123 : vector<2x5xi1>, vector<2x5xf32>
    %c3_i32 = arith.constant 3 : i32
    %152 = arith.index_cast %c3_i32 : i32 to index
    %c0_60 = arith.constant 0 : index
    %c0_61 = arith.constant 0 : index
    %153 = vector.load %arg1[%152, %c0_60, %c0_61] : memref<8x2x5xf32, #tpu.memory_space<vmem>>, vector<1x2x5xf32>
    %154 = vector.shape_cast %153 : vector<1x2x5xf32> to vector<2x5xf32>
    %155 = arith.index_cast %c3_i32 : i32 to index
    %c0_62 = arith.constant 0 : index
    %c0_63 = arith.constant 0 : index
    %156 = vector.load %arg3[%155, %c0_62, %c0_63] : memref<8x2x1xf32, #tpu.memory_space<vmem>>, vector<1x2x1xf32>
    %157 = vector.shape_cast %156 : vector<1x2x1xf32> to vector<2x1xf32>
    %c0_i32_64 = arith.constant 0 : i32
    %158 = arith.cmpi eq, %arg0, %c0_i32_64 : i32
    %c0_i32_65 = arith.constant 0 : i32
    %159 = arith.cmpi eq, %c3_i32, %c0_i32_65 : i32
    %160 = arith.andi %158, %159 : i1
    %cst_66 = arith.constant 0.000000e+00 : f32
    %161 = vector.broadcast %cst_66 : f32 to vector<2x1xf32>
    %162 = arith.select %160, %161, %157 : vector<2x1xf32>
    %cst_67 = arith.constant dense<0xFF800000> : vector<2xf32>
    %163 = vector.multi_reduction <maximumf>, %151, %cst_67 [1] : vector<2x5xf32> to vector<2xf32>
    %164 = vector.shape_cast %163 : vector<2xf32> to vector<2x1xf32>
    %165 = vector.broadcast %164 : vector<2x1xf32> to vector<2x5xf32>
    %166 = arith.subf %151, %165 : vector<2x5xf32>
    %167 = math.exp %166 : vector<2x5xf32>
    %cst_68 = arith.constant dense<0.000000e+00> : vector<2x5xf32>
    %168 = tpu.matmul %167, %5, %cst_68 {dimension_numbers = #tpu.dot_dimension_numbers<[1], [0], [0], [1], [0, 0, 1, 1], [], []>} : vector<2x5xf32>, vector<5x5xf32>, vector<2x5xf32> -> vector<2x5xf32>
    %169 = vector.broadcast %164 : vector<2x1xf32> to vector<2x5xf32>
    %170 = vector.broadcast %2 : vector<1x5xf32> to vector<2x5xf32>
    %171 = arith.addf %169, %170 : vector<2x5xf32>
    %172 = math.log %168 : vector<2x5xf32>
    %173 = arith.addf %171, %172 : vector<2x5xf32>
    %174 = arith.addf %173, %154 : vector<2x5xf32>
    %cst_69 = arith.constant 0.000000e+00 : f32
    %175 = vector.broadcast %cst_69 : f32 to vector<2x1xf32>
    %176 = arith.cmpf ogt, %162, %175 : vector<2x1xf32>
    %177 = vector.shape_cast %176 : vector<2x1xi1> to vector<2x1xi1>
    %178 = vector.broadcast %177 : vector<2x1xi1> to vector<2x5xi1>
    %179 = arith.select %178, %174, %151 : vector<2x5xi1>, vector<2x5xf32>
    %c4_i32 = arith.constant 4 : i32
    %180 = arith.index_cast %c4_i32 : i32 to index
    %c0_70 = arith.constant 0 : index
    %c0_71 = arith.constant 0 : index
    %181 = vector.load %arg1[%180, %c0_70, %c0_71] : memref<8x2x5xf32, #tpu.memory_space<vmem>>, vector<1x2x5xf32>
    %182 = vector.shape_cast %181 : vector<1x2x5xf32> to vector<2x5xf32>
    %183 = arith.index_cast %c4_i32 : i32 to index
    %c0_72 = arith.constant 0 : index
    %c0_73 = arith.constant 0 : index
    %184 = vector.load %arg3[%183, %c0_72, %c0_73] : memref<8x2x1xf32, #tpu.memory_space<vmem>>, vector<1x2x1xf32>
    %185 = vector.shape_cast %184 : vector<1x2x1xf32> to vector<2x1xf32>
    %c0_i32_74 = arith.constant 0 : i32
    %186 = arith.cmpi eq, %arg0, %c0_i32_74 : i32
    %c0_i32_75 = arith.constant 0 : i32
    %187 = arith.cmpi eq, %c4_i32, %c0_i32_75 : i32
    %188 = arith.andi %186, %187 : i1
    %cst_76 = arith.constant 0.000000e+00 : f32
    %189 = vector.broadcast %cst_76 : f32 to vector<2x1xf32>
    %190 = arith.select %188, %189, %185 : vector<2x1xf32>
    %cst_77 = arith.constant dense<0xFF800000> : vector<2xf32>
    %191 = vector.multi_reduction <maximumf>, %179, %cst_77 [1] : vector<2x5xf32> to vector<2xf32>
    %192 = vector.shape_cast %191 : vector<2xf32> to vector<2x1xf32>
    %193 = vector.broadcast %192 : vector<2x1xf32> to vector<2x5xf32>
    %194 = arith.subf %179, %193 : vector<2x5xf32>
    %195 = math.exp %194 : vector<2x5xf32>
    %cst_78 = arith.constant dense<0.000000e+00> : vector<2x5xf32>
    %196 = tpu.matmul %195, %5, %cst_78 {dimension_numbers = #tpu.dot_dimension_numbers<[1], [0], [0], [1], [0, 0, 1, 1], [], []>} : vector<2x5xf32>, vector<5x5xf32>, vector<2x5xf32> -> vector<2x5xf32>
    %197 = vector.broadcast %192 : vector<2x1xf32> to vector<2x5xf32>
    %198 = vector.broadcast %2 : vector<1x5xf32> to vector<2x5xf32>
    %199 = arith.addf %197, %198 : vector<2x5xf32>
    %200 = math.log %196 : vector<2x5xf32>
    %201 = arith.addf %199, %200 : vector<2x5xf32>
    %202 = arith.addf %201, %182 : vector<2x5xf32>
    %cst_79 = arith.constant 0.000000e+00 : f32
    %203 = vector.broadcast %cst_79 : f32 to vector<2x1xf32>
    %204 = arith.cmpf ogt, %190, %203 : vector<2x1xf32>
    %205 = vector.shape_cast %204 : vector<2x1xi1> to vector<2x1xi1>
    %206 = vector.broadcast %205 : vector<2x1xi1> to vector<2x5xi1>
    %207 = arith.select %206, %202, %179 : vector<2x5xi1>, vector<2x5xf32>
    %c5_i32_80 = arith.constant 5 : i32
    %208 = arith.index_cast %c5_i32_80 : i32 to index
    %c0_81 = arith.constant 0 : index
    %c0_82 = arith.constant 0 : index
    %209 = vector.load %arg1[%208, %c0_81, %c0_82] : memref<8x2x5xf32, #tpu.memory_space<vmem>>, vector<1x2x5xf32>
    %210 = vector.shape_cast %209 : vector<1x2x5xf32> to vector<2x5xf32>
    %211 = arith.index_cast %c5_i32_80 : i32 to index
    %c0_83 = arith.constant 0 : index
    %c0_84 = arith.constant 0 : index
    %212 = vector.load %arg3[%211, %c0_83, %c0_84] : memref<8x2x1xf32, #tpu.memory_space<vmem>>, vector<1x2x1xf32>
    %213 = vector.shape_cast %212 : vector<1x2x1xf32> to vector<2x1xf32>
    %c0_i32_85 = arith.constant 0 : i32
    %214 = arith.cmpi eq, %arg0, %c0_i32_85 : i32
    %c0_i32_86 = arith.constant 0 : i32
    %215 = arith.cmpi eq, %c5_i32_80, %c0_i32_86 : i32
    %216 = arith.andi %214, %215 : i1
    %cst_87 = arith.constant 0.000000e+00 : f32
    %217 = vector.broadcast %cst_87 : f32 to vector<2x1xf32>
    %218 = arith.select %216, %217, %213 : vector<2x1xf32>
    %cst_88 = arith.constant dense<0xFF800000> : vector<2xf32>
    %219 = vector.multi_reduction <maximumf>, %207, %cst_88 [1] : vector<2x5xf32> to vector<2xf32>
    %220 = vector.shape_cast %219 : vector<2xf32> to vector<2x1xf32>
    %221 = vector.broadcast %220 : vector<2x1xf32> to vector<2x5xf32>
    %222 = arith.subf %207, %221 : vector<2x5xf32>
    %223 = math.exp %222 : vector<2x5xf32>
    %cst_89 = arith.constant dense<0.000000e+00> : vector<2x5xf32>
    %224 = tpu.matmul %223, %5, %cst_89 {dimension_numbers = #tpu.dot_dimension_numbers<[1], [0], [0], [1], [0, 0, 1, 1], [], []>} : vector<2x5xf32>, vector<5x5xf32>, vector<2x5xf32> -> vector<2x5xf32>
    %225 = vector.broadcast %220 : vector<2x1xf32> to vector<2x5xf32>
    %226 = vector.broadcast %2 : vector<1x5xf32> to vector<2x5xf32>
    %227 = arith.addf %225, %226 : vector<2x5xf32>
    %228 = math.log %224 : vector<2x5xf32>
    %229 = arith.addf %227, %228 : vector<2x5xf32>
    %230 = arith.addf %229, %210 : vector<2x5xf32>
    %cst_90 = arith.constant 0.000000e+00 : f32
    %231 = vector.broadcast %cst_90 : f32 to vector<2x1xf32>
    %232 = arith.cmpf ogt, %218, %231 : vector<2x1xf32>
    %233 = vector.shape_cast %232 : vector<2x1xi1> to vector<2x1xi1>
    %234 = vector.broadcast %233 : vector<2x1xi1> to vector<2x5xi1>
    %235 = arith.select %234, %230, %207 : vector<2x5xi1>, vector<2x5xf32>
    %c6_i32 = arith.constant 6 : i32
    %236 = arith.index_cast %c6_i32 : i32 to index
    %c0_91 = arith.constant 0 : index
    %c0_92 = arith.constant 0 : index
    %237 = vector.load %arg1[%236, %c0_91, %c0_92] : memref<8x2x5xf32, #tpu.memory_space<vmem>>, vector<1x2x5xf32>
    %238 = vector.shape_cast %237 : vector<1x2x5xf32> to vector<2x5xf32>
    %239 = arith.index_cast %c6_i32 : i32 to index
    %c0_93 = arith.constant 0 : index
    %c0_94 = arith.constant 0 : index
    %240 = vector.load %arg3[%239, %c0_93, %c0_94] : memref<8x2x1xf32, #tpu.memory_space<vmem>>, vector<1x2x1xf32>
    %241 = vector.shape_cast %240 : vector<1x2x1xf32> to vector<2x1xf32>
    %c0_i32_95 = arith.constant 0 : i32
    %242 = arith.cmpi eq, %arg0, %c0_i32_95 : i32
    %c0_i32_96 = arith.constant 0 : i32
    %243 = arith.cmpi eq, %c6_i32, %c0_i32_96 : i32
    %244 = arith.andi %242, %243 : i1
    %cst_97 = arith.constant 0.000000e+00 : f32
    %245 = vector.broadcast %cst_97 : f32 to vector<2x1xf32>
    %246 = arith.select %244, %245, %241 : vector<2x1xf32>
    %cst_98 = arith.constant dense<0xFF800000> : vector<2xf32>
    %247 = vector.multi_reduction <maximumf>, %235, %cst_98 [1] : vector<2x5xf32> to vector<2xf32>
    %248 = vector.shape_cast %247 : vector<2xf32> to vector<2x1xf32>
    %249 = vector.broadcast %248 : vector<2x1xf32> to vector<2x5xf32>
    %250 = arith.subf %235, %249 : vector<2x5xf32>
    %251 = math.exp %250 : vector<2x5xf32>
    %cst_99 = arith.constant dense<0.000000e+00> : vector<2x5xf32>
    %252 = tpu.matmul %251, %5, %cst_99 {dimension_numbers = #tpu.dot_dimension_numbers<[1], [0], [0], [1], [0, 0, 1, 1], [], []>} : vector<2x5xf32>, vector<5x5xf32>, vector<2x5xf32> -> vector<2x5xf32>
    %253 = vector.broadcast %248 : vector<2x1xf32> to vector<2x5xf32>
    %254 = vector.broadcast %2 : vector<1x5xf32> to vector<2x5xf32>
    %255 = arith.addf %253, %254 : vector<2x5xf32>
    %256 = math.log %252 : vector<2x5xf32>
    %257 = arith.addf %255, %256 : vector<2x5xf32>
    %258 = arith.addf %257, %238 : vector<2x5xf32>
    %cst_100 = arith.constant 0.000000e+00 : f32
    %259 = vector.broadcast %cst_100 : f32 to vector<2x1xf32>
    %260 = arith.cmpf ogt, %246, %259 : vector<2x1xf32>
    %261 = vector.shape_cast %260 : vector<2x1xi1> to vector<2x1xi1>
    %262 = vector.broadcast %261 : vector<2x1xi1> to vector<2x5xi1>
    %263 = arith.select %262, %258, %235 : vector<2x5xi1>, vector<2x5xf32>
    %c7_i32 = arith.constant 7 : i32
    %264 = arith.index_cast %c7_i32 : i32 to index
    %c0_101 = arith.constant 0 : index
    %c0_102 = arith.constant 0 : index
    %265 = vector.load %arg1[%264, %c0_101, %c0_102] : memref<8x2x5xf32, #tpu.memory_space<vmem>>, vector<1x2x5xf32>
    %266 = vector.shape_cast %265 : vector<1x2x5xf32> to vector<2x5xf32>
    %267 = arith.index_cast %c7_i32 : i32 to index
    %c0_103 = arith.constant 0 : index
    %c0_104 = arith.constant 0 : index
    %268 = vector.load %arg3[%267, %c0_103, %c0_104] : memref<8x2x1xf32, #tpu.memory_space<vmem>>, vector<1x2x1xf32>
    %269 = vector.shape_cast %268 : vector<1x2x1xf32> to vector<2x1xf32>
    %c0_i32_105 = arith.constant 0 : i32
    %270 = arith.cmpi eq, %arg0, %c0_i32_105 : i32
    %c0_i32_106 = arith.constant 0 : i32
    %271 = arith.cmpi eq, %c7_i32, %c0_i32_106 : i32
    %272 = arith.andi %270, %271 : i1
    %cst_107 = arith.constant 0.000000e+00 : f32
    %273 = vector.broadcast %cst_107 : f32 to vector<2x1xf32>
    %274 = arith.select %272, %273, %269 : vector<2x1xf32>
    %cst_108 = arith.constant dense<0xFF800000> : vector<2xf32>
    %275 = vector.multi_reduction <maximumf>, %263, %cst_108 [1] : vector<2x5xf32> to vector<2xf32>
    %276 = vector.shape_cast %275 : vector<2xf32> to vector<2x1xf32>
    %277 = vector.broadcast %276 : vector<2x1xf32> to vector<2x5xf32>
    %278 = arith.subf %263, %277 : vector<2x5xf32>
    %279 = math.exp %278 : vector<2x5xf32>
    %cst_109 = arith.constant dense<0.000000e+00> : vector<2x5xf32>
    %280 = tpu.matmul %279, %5, %cst_109 {dimension_numbers = #tpu.dot_dimension_numbers<[1], [0], [0], [1], [0, 0, 1, 1], [], []>} : vector<2x5xf32>, vector<5x5xf32>, vector<2x5xf32> -> vector<2x5xf32>
    %281 = vector.broadcast %276 : vector<2x1xf32> to vector<2x5xf32>
    %282 = vector.broadcast %2 : vector<1x5xf32> to vector<2x5xf32>
    %283 = arith.addf %281, %282 : vector<2x5xf32>
    %284 = math.log %280 : vector<2x5xf32>
    %285 = arith.addf %283, %284 : vector<2x5xf32>
    %286 = arith.addf %285, %266 : vector<2x5xf32>
    %cst_110 = arith.constant 0.000000e+00 : f32
    %287 = vector.broadcast %cst_110 : f32 to vector<2x1xf32>
    %288 = arith.cmpf ogt, %274, %287 : vector<2x1xf32>
    %289 = vector.shape_cast %288 : vector<2x1xi1> to vector<2x1xi1>
    %290 = vector.broadcast %289 : vector<2x1xi1> to vector<2x5xi1>
    %291 = arith.select %290, %286, %263 : vector<2x5xi1>, vector<2x5xf32>
    %c8_i32 = arith.constant 8 : i32
    %c0_111 = arith.constant 0 : index
    %c0_112 = arith.constant 0 : index
    %292 = vector.load %arg7[%c0_111, %c0_112] : memref<2x5xf32, #tpu.memory_space<vmem>>, vector<2x5xf32>
    tpu.vector_store %arg7[%c0_111, %c0_112], %291 {strides = array<i32>} : memref<2x5xf32, #tpu.memory_space<vmem>>, vector<2x5xf32>,
    %c0_i32_113 = arith.constant 0 : i32
    %293 = arith.cmpi eq, %arg0, %c0_i32_113 : i32
    %294 = arith.extui %293 : i1 to i32
    %c0_i32_114 = arith.constant 0 : i32
    %295 = arith.cmpi ne, %294, %c0_i32_114 : i32
    scf.if %295 {
      %cst_115 = arith.constant dense<0xFF800000> : vector<2xf32>
      %296 = vector.multi_reduction <maximumf>, %291, %cst_115 [1] : vector<2x5xf32> to vector<2xf32>
      %297 = vector.shape_cast %296 : vector<2xf32> to vector<2x1xf32>
      %298 = vector.broadcast %297 : vector<2x1xf32> to vector<2x5xf32>
      %299 = arith.subf %291, %298 : vector<2x5xf32>
      %300 = math.exp %299 : vector<2x5xf32>
      %cst_116 = arith.constant dense<0.000000e+00> : vector<2xf32>
      %301 = vector.multi_reduction <add>, %300, %cst_116 [1] : vector<2x5xf32> to vector<2xf32>
      %302 = vector.shape_cast %301 : vector<2xf32> to vector<2x1xf32>
      %303 = math.log %302 : vector<2x1xf32>
      %304 = arith.addf %297, %303 : vector<2x1xf32>
      %c0_117 = arith.constant 0 : index
      %c0_118 = arith.constant 0 : index
      %305 = vector.load %arg8[%c0_117, %c0_118] : memref<2x1xf32, #tpu.memory_space<vmem>>, vector<2x1xf32>
      %306 = arith.subf %305, %304 : vector<2x1xf32>
      %cst_119 = arith.constant dense<0.000000e+00> : vector<1xf32>
      %307 = vector.multi_reduction <add>, %306, %cst_119 [0] : vector<2x1xf32> to vector<1xf32>
      %308 = vector.shape_cast %307 : vector<1xf32> to vector<1x1xf32>
      %c0_120 = arith.constant 0 : index
      %c0_121 = arith.constant 0 : index
      %309 = vector.load %arg6[%c0_120, %c0_121] : memref<1x1xf32, #tpu.memory_space<vmem>>, vector<1x1xf32>
      tpu.vector_store %arg6[%c0_120, %c0_121], %308 {strides = array<i32>} : memref<1x1xf32, #tpu.memory_space<vmem>>, vector<1x1xf32>,
    } else {
    }
    return
  }
  func.func @transform_0(%arg0: i32) -> (i32, i32, i32) {
    %c0_i32 = arith.constant 0 : i32
    %c0_i32_0 = arith.constant 0 : i32
    %c0_i32_1 = arith.constant 0 : i32
    return %arg0, %c0_i32, %c0_i32_0 : i32, i32, i32
  }
  func.func @transform_1(%arg0: i32) -> (i32, i32, i32) {
    %c0_i32 = arith.constant 0 : i32
    %c0_i32_0 = arith.constant 0 : i32
    %c0_i32_1 = arith.constant 0 : i32
    return %arg0, %c0_i32, %c0_i32_0 : i32, i32, i32
  }
  func.func @transform_2(%arg0: i32) -> (i32, i32, i32) {
    %c0_i32 = arith.constant 0 : i32
    %c0_i32_0 = arith.constant 0 : i32
    %c0_i32_1 = arith.constant 0 : i32
    return %arg0, %c0_i32, %c0_i32_0 : i32, i32, i32
  }
  func.func @transform_3(%arg0: i32) -> (i32, i32) {
    %c0_i32 = arith.constant 0 : i32
    %c0_i32_0 = arith.constant 0 : i32
    %c0_i32_1 = arith.constant 0 : i32
    return %c0_i32, %c0_i32_0 : i32, i32
  }
  func.func @transform_4(%arg0: i32) -> (i32, i32) {
    %c0_i32 = arith.constant 0 : i32
    %c0_i32_0 = arith.constant 0 : i32
    %c0_i32_1 = arith.constant 0 : i32
    return %c0_i32, %c0_i32_0 : i32, i32
  }
  func.func @transform_5(%arg0: i32) -> (i32, i32) {
    %c0_i32 = arith.constant 0 : i32
    %c0_i32_0 = arith.constant 0 : i32
    %c0_i32_1 = arith.constant 0 : i32
    return %c0_i32, %c0_i32_0 : i32, i32
  }
}

</mosaic_0001>

<llo_original>
// kernel: crf_forward.1
$region0: #{crf_forward.1}
  #allocation0 [shape = 'u32[]', space=smem, size = 0x4, offset = 0x4, fixed_abs, tag = 'smem constant byte address 0x4 - core index']
  #allocation1 [shape = 'u32[144,128]{1,0:T(1,128)}', space=vmem, size = 0x12000, scoped, tag = 'internal scratch']
  #allocation2 [shape = 'f32[2,5]{1,0:T(2,128)}', space=vmem, size = 0x400, scoped, tag = 'scratch operand']
  #allocation3 [shape = 'f32[2,1]{1,0:T(2,128)}', space=vmem, size = 0x400, scoped, tag = 'scratch operand']
  #allocation4 [shape = 's32[2,1]{1,0:T(2,128)}', space=vmem, size = 0x400, scoped, tag = 'scratch operand']
  %s0 = inlined_call_operand.vmem [shape: f32[8,2,5], index: 0, kind: input, shape index: {}]
  %s1 = inlined_call_operand.vmem [shape: s32[8,2,1], index: 1, kind: input, shape index: {}]
  %s2 = inlined_call_operand.vmem [shape: f32[8,2,1], index: 2, kind: input, shape index: {}]
  %s3 = inlined_call_operand.vmem [shape: f32[5,5], index: 3, kind: input, shape index: {}]
  %s4 = inlined_call_operand.vmem [shape: f32[1,25], index: 4, kind: input, shape index: {}]
  %s5 = inlined_call_operand.hbm [shape: f32[1,1], index: 5, kind: output, shape index: {}]
  %s6 = sld [smem:[#allocation0]]
  $region38: #{crf_forward.1} parent=0
    _
  %s8 = ssub.s32 1, %s6
  %s9 = scalar_select 0, %s8, %s6
  $region1: #{crf_forward.1} parent=0
    #allocation5 [shape = 'u8[512]{0}', space=vmem, size = 0x400, scoped, tag = 'output window, operand 0, single buffered']
    #allocation6 [shape = 's32[1]{0}', space=sflag, size = 0x4, scoped, tag = 'scoped memory for crf_forward.1']
    %10 = vsyncpa [#allocation6], 0
    // Predicated region
    $region2: #{crf_forward.1} parent=1 // pred_check
      _
    $region3: #{crf_forward.1} parent=1 // pred_check_branch
      %12 = sbr.rel (0) target = $region5
    $region4: #{crf_forward.1} parent=1 // pred_region
      _
    $region5: #{crf_forward.1} parent=1 // pred_fallthru
      _
    // Predicated region
    $region6: #{crf_forward.1} parent=1 // pred_check
      _
    $region7: #{crf_forward.1} parent=1 // pred_check_branch
      %14 = sbr.rel (0) target = $region9
    $region8: #{crf_forward.1} parent=1 // pred_region
      _
    $region9: #{crf_forward.1} parent=1 // pred_fallthru
      _
    // Predicated region
    $region10: #{crf_forward.1} parent=1 // pred_check
      _
    $region11: #{crf_forward.1} parent=1 // pred_check_branch
      %16 = sbr.rel (0) target = $region13
    $region12: #{crf_forward.1} parent=1 // pred_region
      _
    $region13: #{crf_forward.1} parent=1 // pred_fallthru
      _
    // Predicated region
    $region14: #{crf_forward.1} parent=1 // pred_check
      _
    $region15: #{crf_forward.1} parent=1 // pred_check_branch
      %18 = sbr.rel (0) target = $region17
    $region16: #{crf_forward.1} parent=1 // pred_region
      _
    $region17: #{crf_forward.1} parent=1 // pred_fallthru
      _
    // Predicated region
    $region18: #{crf_forward.1} parent=1 // pred_check
      _
    $region19: #{crf_forward.1} parent=1 // pred_check_branch
      %20 = sbr.rel (0) target = $region21
    $region20: #{crf_forward.1} parent=1 // pred_region
      _
    $region21: #{crf_forward.1} parent=1 // pred_fallthru
      _
    %v21 = vld [vmem:[%s3] sm:$0x1f]
    %vm22 = vcmask 36864
    %v23 = vsel %vm22, %v21, -inf
    %v24 = vrot.slane %v23, 4
    %v25 = vmax.f32 %v23, %v24
    %v26 = vrot.slane %v25, 2
    %v27 = vmax.f32 %v25, %v26
    %v28 = vrot.slane %v27, 1
    %v29 = vmax.f32 %v27, %v28
    %v30 = vsub.f32 %v21, %v29
    %v31 = vmul.f32 %v30, 1.442695
    %v32 = vpow.pop %v31
    %v33 = vld [vmem:[%s4] sm:$0x1]
    %p34 = scmp.eq.s32.totalorder 0, 0
    // Predicated region
    $region22: #{crf_forward.1} parent=1 // pred_check
      %p35 = pneg %p34
    $region23: #{crf_forward.1} parent=1 // pred_check_branch
      %37 = sbr.rel (%p35) target = $region25
    $region24: #{crf_forward.1} parent=1 // pred_region
      %v38 = vld [vmem:[%s0] sm:$0x3]
      %vm39 = vcmask 33792
      %40 = vst.msk [vmem:[#allocation2] sm:$0x3] %vm39, %v38
      %vm41 = vcmask 1024
      %42 = vst.msk [vmem:[#allocation3] sm:$0x3] %vm41, 0.0
      %43 = vst.msk [vmem:[#allocation4] sm:$0x3] %vm41, 4294967295
    $region25: #{crf_forward.1} parent=1 // pred_fallthru
      _
    %v44 = vld [vmem:[%s1] sm:$0x3]
    %v45 = vld [vmem:[%s1 + $0x2] sm:$0x3]
    %v46 = vld [vmem:[%s1 + $0x4] sm:$0x3]
    %v47 = vld [vmem:[%s1 + $0x6] sm:$0x3]
    %v48 = vld [vmem:[%s1 + $0x8] sm:$0x3]
    %v49 = vld [vmem:[%s1 + $0xa] sm:$0x3]
    %v50 = vld [vmem:[%s1 + $0xc] sm:$0x3]
    %v51 = vld [vmem:[%s1 + $0xe] sm:$0x3]
    %v52 = vld [vmem:[%s2] sm:$0x3]
    %v53 = vld [vmem:[%s2 + $0x2] sm:$0x3]
    %v54 = vld [vmem:[%s2 + $0x4] sm:$0x3]
    %v55 = vld [vmem:[%s2 + $0x6] sm:$0x3]
    %v56 = vld [vmem:[%s2 + $0x8] sm:$0x3]
    %v57 = vld [vmem:[%s2 + $0xa] sm:$0x3]
    %v58 = vld [vmem:[%s2 + $0xc] sm:$0x3]
    %v59 = vld [vmem:[%s2 + $0xe] sm:$0x3]
    %v60 = vld [vmem:[%s0] sm:$0x3]
    %v61 = vld [vmem:[%s0 + $0x2] sm:$0x3]
    %v62 = vld [vmem:[%s0 + $0x4] sm:$0x3]
    %v63 = vld [vmem:[%s0 + $0x6] sm:$0x3]
    %v64 = vld [vmem:[%s0 + $0x8] sm:$0x3]
    %v65 = vld [vmem:[%s0 + $0xa] sm:$0x3]
    %v66 = vld [vmem:[%s0 + $0xc] sm:$0x3]
    %v67 = vld [vmem:[%s0 + $0xe] sm:$0x3]
    %v68 = vlaneseq
    %v69 = vand.u32 %v68, 127
    %70 = vset.pattern.permute.xlu0 0
    %71 = vperm.xlu0 %70, %v44
    %v72 = vpop.permute.xlu0 %71
    %73 = vset.pattern.permute.xlu0 0
    %74 = vperm.xlu0 %73, %v45
    %v75 = vpop.permute.xlu0 %74
    %76 = vset.pattern.permute.xlu0 0
    %77 = vperm.xlu0 %76, %v46
    %v78 = vpop.permute.xlu0 %77
    %79 = vset.pattern.permute.xlu0 0
    %80 = vperm.xlu0 %79, %v47
    %v81 = vpop.permute.xlu0 %80
    %82 = vset.pattern.permute.xlu0 0
    %83 = vperm.xlu0 %82, %v48
    %v84 = vpop.permute.xlu0 %83
    %85 = vset.pattern.permute.xlu0 0
    %86 = vperm.xlu0 %85, %v49
    %v87 = vpop.permute.xlu0 %86
    %88 = vset.pattern.permute.xlu0 0
    %89 = vperm.xlu0 %88, %v50
    %v90 = vpop.permute.xlu0 %89
    %91 = vset.pattern.permute.xlu0 0
    %92 = vperm.xlu0 %91, %v51
    %v93 = vpop.permute.xlu0 %92
    %vm94 = vcmp.eq.s32.totalorder %v69, %v72
    %vm95 = vcmp.eq.s32.totalorder %v69, %v75
    %vm96 = vcmp.eq.s32.totalorder %v69, %v78
    %vm97 = vcmp.eq.s32.totalorder %v69, %v81
    %vm98 = vcmp.eq.s32.totalorder %v69, %v84
    %vm99 = vcmp.eq.s32.totalorder %v69, %v87
    %vm100 = vcmp.eq.s32.totalorder %v69, %v90
    %vm101 = vcmp.eq.s32.totalorder %v69, %v93
    %v102 = vsel %vm94, 1, 0
    %v103 = vsel %vm95, 1, 0
    %v104 = vsel %vm96, 1, 0
    %v105 = vsel %vm97, 1, 0
    %v106 = vsel %vm98, 1, 0
    %v107 = vsel %vm99, 1, 0
    %v108 = vsel %vm100, 1, 0
    %v109 = vsel %vm101, 1, 0
    %v110 = vcvt.s32.f32 %v102
    %v111 = vcvt.s32.f32 %v103
    %v112 = vcvt.s32.f32 %v104
    %v113 = vcvt.s32.f32 %v105
    %v114 = vcvt.s32.f32 %v106
    %v115 = vcvt.s32.f32 %v107
    %v116 = vcvt.s32.f32 %v108
    %v117 = vcvt.s32.f32 %v109
    %v118 = vmul.f32 %v60, %v110
    %v119 = vmul.f32 %v61, %v111
    %v120 = vmul.f32 %v62, %v112
    %v121 = vmul.f32 %v63, %v113
    %v122 = vmul.f32 %v64, %v114
    %v123 = vmul.f32 %v65, %v115
    %v124 = vmul.f32 %v66, %v116
    %v125 = vmul.f32 %v67, %v117
    %vm126 = vcmask 33792
    %v127 = vsel %vm126, %v118, 0.0
    %128 = vadd.xlane.f32.xlu0 %v127
    %v129 = vpop.xlane.xlu0 %128
    %v130 = vsel %vm126, %v119, 0.0
    %131 = vadd.xlane.f32.xlu0 %v130
    %v132 = vpop.xlane.xlu0 %131
    %v133 = vsel %vm126, %v120, 0.0
    %134 = vadd.xlane.f32.xlu0 %v133
    %v135 = vpop.xlane.xlu0 %134
    %v136 = vsel %vm126, %v121, 0.0
    %137 = vadd.xlane.f32.xlu0 %v136
    %v138 = vpop.xlane.xlu0 %137
    %v139 = vsel %vm126, %v122, 0.0
    %140 = vadd.xlane.f32.xlu0 %v139
    %v141 = vpop.xlane.xlu0 %140
    %v142 = vsel %vm126, %v123, 0.0
    %143 = vadd.xlane.f32.xlu0 %v142
    %v144 = vpop.xlane.xlu0 %143
    %v145 = vsel %vm126, %v124, 0.0
    %146 = vadd.xlane.f32.xlu0 %v145
    %v147 = vpop.xlane.xlu0 %146
    %v148 = vsel %vm126, %v125, 0.0
    %149 = vadd.xlane.f32.xlu0 %v148
    %v150 = vpop.xlane.xlu0 %149
    %v151 = vmul.f32 %v129, %v52
    %v152 = vmul.f32 %v132, %v53
    %v153 = vmul.f32 %v135, %v54
    %v154 = vmul.f32 %v138, %v55
    %v155 = vmul.f32 %v141, %v56
    %v156 = vmul.f32 %v144, %v57
    %v157 = vmul.f32 %v147, %v58
    %v158 = vmul.f32 %v150, %v59
    %vm159 = vcmask 1024
    %v160 = vsel %vm159, %v151, 0.0
    %v161 = vsel %vm159, %v152, 0.0
    %v162 = vadd.f32 %v160, %v161
    %v163 = vsel %vm159, %v153, 0.0
    %v164 = vadd.f32 %v162, %v163
    %v165 = vsel %vm159, %v154, 0.0
    %v166 = vadd.f32 %v164, %v165
    %v167 = vsel %vm159, %v155, 0.0
    %v168 = vadd.f32 %v166, %v167
    %v169 = vsel %vm159, %v156, 0.0
    %v170 = vadd.f32 %v168, %v169
    %v171 = vsel %vm159, %v157, 0.0
    %v172 = vadd.f32 %v170, %v171
    %v173 = vsel %vm159, %v158, 0.0
    %v174 = vadd.f32 %v172, %v173
    %v175 = vmul.u32 %v44, 5
    %v176 = vmul.u32 %v45, 5
    %v177 = vmul.u32 %v46, 5
    %v178 = vmul.u32 %v47, 5
    %v179 = vmul.u32 %v48, 5
    %v180 = vmul.u32 %v49, 5
    %v181 = vmul.u32 %v50, 5
    %v182 = vadd.s32 %v175, %v45
    %v183 = vadd.s32 %v176, %v46
    %v184 = vadd.s32 %v177, %v47
    %v185 = vadd.s32 %v178, %v48
    %v186 = vadd.s32 %v179, %v49
    %v187 = vadd.s32 %v180, %v50
    %v188 = vadd.s32 %v181, %v51
    %189 = vset.pattern.permute.xlu0 0
    %190 = vperm.xlu0 %189, %v182
    %v191 = vpop.permute.xlu0 %190
    %192 = vset.pattern.permute.xlu0 0
    %193 = vperm.xlu0 %192, %v183
    %v194 = vpop.permute.xlu0 %193
    %195 = vset.pattern.permute.xlu0 0
    %196 = vperm.xlu0 %195, %v184
    %v197 = vpop.permute.xlu0 %196
    %198 = vset.pattern.permute.xlu0 0
    %199 = vperm.xlu0 %198, %v185
    %v200 = vpop.permute.xlu0 %199
    %201 = vset.pattern.permute.xlu0 0
    %202 = vperm.xlu0 %201, %v186
    %v203 = vpop.permute.xlu0 %202
    %204 = vset.pattern.permute.xlu0 0
    %205 = vperm.xlu0 %204, %v187
    %v206 = vpop.permute.xlu0 %205
    %207 = vset.pattern.permute.xlu0 0
    %208 = vperm.xlu0 %207, %v188
    %v209 = vpop.permute.xlu0 %208
    %vm210 = vcmp.eq.s32.totalorder %v69, %v191
    %vm211 = vcmp.eq.s32.totalorder %v69, %v194
    %vm212 = vcmp.eq.s32.totalorder %v69, %v197
    %vm213 = vcmp.eq.s32.totalorder %v69, %v200
    %vm214 = vcmp.eq.s32.totalorder %v69, %v203
    %vm215 = vcmp.eq.s32.totalorder %v69, %v206
    %vm216 = vcmp.eq.s32.totalorder %v69, %v209
    %v217 = vsel %vm210, 1, 0
    %v218 = vsel %vm211, 1, 0
    %v219 = vsel %vm212, 1, 0
    %v220 = vsel %vm213, 1, 0
    %v221 = vsel %vm214, 1, 0
    %v222 = vsel %vm215, 1, 0
    %v223 = vsel %vm216, 1, 0
    %v224 = vcvt.s32.f32 %v217
    %v225 = vcvt.s32.f32 %v218
    %v226 = vcvt.s32.f32 %v219
    %v227 = vcvt.s32.f32 %v220
    %v228 = vcvt.s32.f32 %v221
    %v229 = vcvt.s32.f32 %v222
    %v230 = vcvt.s32.f32 %v223
    %v232 = vlaneseq
    %v233 = vshrl.u32 %v232, 7
    %v234 = vsub.s32 0, %v233
    %v235 = vrot.slane %v33, %v234
    %v237 = vmul.f32 %v224, %v235
    %v238 = vmul.f32 %v225, %v235
    %v239 = vmul.f32 %v226, %v235
    %v240 = vmul.f32 %v227, %v235
    %v241 = vmul.f32 %v228, %v235
    %v242 = vmul.f32 %v229, %v235
    %v243 = vmul.f32 %v230, %v235
    %vm244 = vcmask 197632
    %v245 = vsel %vm244, %v237, 0.0
    %246 = vadd.xlane.f32.xlu0 %v245
    %v247 = vpop.xlane.xlu0 %246
    %v248 = vsel %vm244, %v238, 0.0
    %249 = vadd.xlane.f32.xlu0 %v248
    %v250 = vpop.xlane.xlu0 %249
    %v251 = vsel %vm244, %v239, 0.0
    %252 = vadd.xlane.f32.xlu0 %v251
    %v253 = vpop.xlane.xlu0 %252
    %v254 = vsel %vm244, %v240, 0.0
    %255 = vadd.xlane.f32.xlu0 %v254
    %v256 = vpop.xlane.xlu0 %255
    %v257 = vsel %vm244, %v241, 0.0
    %258 = vadd.xlane.f32.xlu0 %v257
    %v259 = vpop.xlane.xlu0 %258
    %v260 = vsel %vm244, %v242, 0.0
    %261 = vadd.xlane.f32.xlu0 %v260
    %v262 = vpop.xlane.xlu0 %261
    %v263 = vsel %vm244, %v243, 0.0
    %264 = vadd.xlane.f32.xlu0 %v263
    %v265 = vpop.xlane.xlu0 %264
    %v266 = vmul.f32 %v247, %v53
    %v267 = vmul.f32 %v250, %v54
    %v268 = vmul.f32 %v253, %v55
    %v269 = vmul.f32 %v256, %v56
    %v270 = vmul.f32 %v259, %v57
    %v271 = vmul.f32 %v262, %v58
    %v272 = vmul.f32 %v265, %v59
    %v273 = vsel %vm159, %v266, 0.0
    %v274 = vsel %vm159, %v267, 0.0
    %v275 = vadd.f32 %v273, %v274
    %v276 = vsel %vm159, %v268, 0.0
    %v277 = vadd.f32 %v275, %v276
    %v278 = vsel %vm159, %v269, 0.0
    %v279 = vadd.f32 %v277, %v278
    %v280 = vsel %vm159, %v270, 0.0
    %v281 = vadd.f32 %v279, %v280
    %v282 = vsel %vm159, %v271, 0.0
    %v283 = vadd.f32 %v281, %v282
    %v284 = vsel %vm159, %v272, 0.0
    %v285 = vadd.f32 %v283, %v284
    %v286 = vld [vmem:[#allocation4] sm:$0x3]
    %v287 = vmul.u32 %v286, 5
    %v288 = vadd.s32 %v287, %v44
    %289 = vset.pattern.permute.xlu0 0
    %290 = vperm.xlu0 %289, %v288
    %v291 = vpop.permute.xlu0 %290
    %vm292 = vcmp.eq.s32.totalorder %v69, %v291
    %v293 = vsel %vm292, 1, 0
    %v294 = vcvt.s32.f32 %v293
    %v295 = vmul.f32 %v294, %v235
    %v296 = vsel %vm244, %v295, 0.0
    %297 = vadd.xlane.f32.xlu0 %v296
    %v298 = vpop.xlane.xlu0 %297
    %v299 = vmul.f32 %v298, %v52
    %v300 = vadd.f32 %v285, %v299
    %v301 = vld [vmem:[#allocation3] sm:$0x3]
    %v302 = vadd.f32 %v301, %v174
    %v303 = vadd.f32 %v302, %v300
    %304 = vst.msk [vmem:[#allocation3] sm:$0x3] %vm159, %v303
    %305 = vst.msk [vmem:[#allocation4] sm:$0x3] %vm159, %v51
    %v306 = vld [vmem:[#allocation2] sm:$0x3]
    %v307 = vld [vmem:[%s0] sm:$0x3]
    %v308 = vld [vmem:[%s2] sm:$0x3]
    %s309 = scalar_select %p34, 1, 0
    %v310 = vstv %s309
    %vm311 = vcmp.eq.s32.totalorder %v310, 1
    %v312 = vsel %vm311, 0.0, %v308
    %v313 = vsel %vm126, %v306, -inf
    %314 = vmax.xlane.f32.xlu0 %v313
    %v315 = vpop.xlane.xlu0 %314
    %v316 = vsub.f32 %v306, %v315
    %v317 = vmul.f32 %v316, 1.442695
    %v318 = vpow.pop %v317
    %vm319 = vcmask 39936
    %v321 = vsel %vm319, %v318, 0
    %vm323 = vcmask 1044480
    %v325 = vsel %vm323, %v32, 0
    %327 = vmatprep.subr.mxu0 0.0
    %328 = vmatpush1.msra.mxu0 0.0
    %329 = vmatprep.subr.mxu0 0.0
    %330 = vmatpush1.msra.mxu0 0.0
    %331 = vmatprep.subr.mxu0 0.0
    %332 = vmatpush1.msra.mxu0 0.0
    %333 = vmatprep.subr.mxu0 0.0
    %334 = vmatpush1.msra.mxu0 0.0
    %335 = vmatprep.subr.mxu0 0.0
    %336 = vmatpush1.msra.mxu0 0.0
    %337 = vmatprep.subr.mxu0 0.0
    %338 = vmatpush1.msra.mxu0 0.0
    %339 = vmatprep.subr.mxu0 0.0
    %340 = vmatpush1.msra.mxu0 0.0
    %341 = vmatprep.subr.mxu0 0.0
    %342 = vmatpush1.msra.mxu0 0.0
    %343 = vmatprep.subr.mxu0 0.0
    %344 = vmatpush1.msra.mxu0 0.0
    %345 = vmatprep.subr.mxu0 0.0
    %346 = vmatpush1.msra.mxu0 0.0
    %347 = vmatprep.subr.mxu0 0.0
    %348 = vmatpush1.msra.mxu0 0.0
    %349 = vmatprep.subr.mxu0 0.0
    %350 = vmatpush1.msra.mxu0 0.0
    %351 = vmatprep.subr.mxu0 0.0
    %352 = vmatpush1.msra.mxu0 0.0
    %353 = vmatprep.subr.mxu0 0.0
    %354 = vmatpush1.msra.mxu0 0.0
    %355 = vmatprep.subr.mxu0 0.0
    %356 = vmatpush1.msra.mxu0 0.0
    %357 = vmatprep.subr.mxu0 0.0
    %358 = vmatpush1.msra.mxu0 %v325
    %359 = vmatprep.subr.mxu0 0.0
    %360 = vmatpush2.msra.mxu0 0.0
    %361 = vmatprep.subr.mxu0 0.0
    %362 = vmatpush2.msra.mxu0 0.0
    %363 = vmatprep.subr.mxu0 0.0
    %364 = vmatpush2.msra.mxu0 0.0
    %365 = vmatprep.subr.mxu0 0.0
    %366 = vmatpush2.msra.mxu0 0.0
    %367 = vmatprep.subr.mxu0 0.0
    %368 = vmatpush2.msra.mxu0 0.0
    %369 = vmatprep.subr.mxu0 0.0
    %370 = vmatpush2.msra.mxu0 0.0
    %371 = vmatprep.subr.mxu0 0.0
    %372 = vmatpush2.msra.mxu0 0.0
    %373 = vmatprep.subr.mxu0 0.0
    %374 = vmatpush2.msra.mxu0 0.0
    %375 = vmatprep.subr.mxu0 0.0
    %376 = vmatpush2.msra.mxu0 0.0
    %377 = vmatprep.subr.mxu0 0.0
    %378 = vmatpush2.msra.mxu0 0.0
    %379 = vmatprep.subr.mxu0 0.0
    %380 = vmatpush2.msra.mxu0 0.0
    %381 = vmatprep.subr.mxu0 0.0
    %382 = vmatpush2.msra.mxu0 0.0
    %383 = vmatprep.subr.mxu0 0.0
    %384 = vmatpush2.msra.mxu0 0.0
    %385 = vmatprep.subr.mxu0 0.0
    %386 = vmatpush2.msra.mxu0 0.0
    %387 = vmatprep.subr.mxu0 0.0
    %388 = vmatpush2.msra.mxu0 0.0
    %389 = vmatprep.subr.mxu0 0.0
    %390 = vmatpush2.msra.mxu0 0.0
    %391 = vmatprep.mubr.f32.mxu0 0.0
    %392 = vmatmul.mubr.f32.gmra.mxu0 %v321
    %v393 = vpop.f32.mrf.mxu0
    %v394 = vadd.f32 0.0, %v393
    %v395 = vpop.f32.mrf.mxu0
    %396 = vdwg.mxu0
    %v397 = vadd.f32 %v315, %v29
    %v398 = vlog2.pop %v394
    %v399 = vmul.f32 %v398, 0.6931472
    %v400 = vadd.f32 %v397, %v399
    %v401 = vadd.f32 %v400, %v307
    %vm402 = vcmp.gt.f32.partialorder %v312, 0.0
    %v403 = vsel %vm402, 1, 0
    %404 = vset.pattern.permute.xlu0 0
    %405 = vperm.xlu0 %404, %v403
    %v406 = vpop.permute.xlu0 %405
    %vm407 = vcmp.eq.s32.totalorder %v406, 1
    %v408 = vsel %vm407, %v401, %v306
    %s409 = scalar_lea.vmem %s0, 2
    %v410 = vld [vmem:[%s409] sm:$0x3]
    %s411 = scalar_lea.vmem %s2, 2
    %v412 = vld [vmem:[%s411] sm:$0x3]
    %v413 = vsel %vm126, %v408, -inf
    %414 = vmax.xlane.f32.xlu0 %v413
    %v415 = vpop.xlane.xlu0 %414
    %v416 = vsub.f32 %v408, %v415
    %v417 = vmul.f32 %v416, 1.442695
    %v418 = vpow.pop %v417
    %v420 = vsel %vm319, %v418, 0
    %422 = vmatprep.subr.mxu0 0.0
    %423 = vmatpush1.msra.mxu0 0.0
    %424 = vmatprep.subr.mxu0 0.0
    %425 = vmatpush1.msra.mxu0 0.0
    %426 = vmatprep.subr.mxu0 0.0
    %427 = vmatpush1.msra.mxu0 0.0
    %428 = vmatprep.subr.mxu0 0.0
    %429 = vmatpush1.msra.mxu0 0.0
    %430 = vmatprep.subr.mxu0 0.0
    %431 = vmatpush1.msra.mxu0 0.0
    %432 = vmatprep.subr.mxu0 0.0
    %433 = vmatpush1.msra.mxu0 0.0
    %434 = vmatprep.subr.mxu0 0.0
    %435 = vmatpush1.msra.mxu0 0.0
    %436 = vmatprep.subr.mxu0 0.0
    %437 = vmatpush1.msra.mxu0 0.0
    %438 = vmatprep.subr.mxu0 0.0
    %439 = vmatpush1.msra.mxu0 0.0
    %440 = vmatprep.subr.mxu0 0.0
    %441 = vmatpush1.msra.mxu0 0.0
    %442 = vmatprep.subr.mxu0 0.0
    %443 = vmatpush1.msra.mxu0 0.0
    %444 = vmatprep.subr.mxu0 0.0
    %445 = vmatpush1.msra.mxu0 0.0
    %446 = vmatprep.subr.mxu0 0.0
    %447 = vmatpush1.msra.mxu0 0.0
    %448 = vmatprep.subr.mxu0 0.0
    %449 = vmatpush1.msra.mxu0 0.0
    %450 = vmatprep.subr.mxu0 0.0
    %451 = vmatpush1.msra.mxu0 0.0
    %452 = vmatprep.subr.mxu0 0.0
    %453 = vmatpush1.msra.mxu0 %v325
    %454 = vmatprep.subr.mxu0 0.0
    %455 = vmatpush2.msra.mxu0 0.0
    %456 = vmatprep.subr.mxu0 0.0
    %457 = vmatpush2.msra.mxu0 0.0
    %458 = vmatprep.subr.mxu0 0.0
    %459 = vmatpush2.msra.mxu0 0.0
    %460 = vmatprep.subr.mxu0 0.0
    %461 = vmatpush2.msra.mxu0 0.0
    %462 = vmatprep.subr.mxu0 0.0
    %463 = vmatpush2.msra.mxu0 0.0
    %464 = vmatprep.subr.mxu0 0.0
    %465 = vmatpush2.msra.mxu0 0.0
    %466 = vmatprep.subr.mxu0 0.0
    %467 = vmatpush2.msra.mxu0 0.0
    %468 = vmatprep.subr.mxu0 0.0
    %469 = vmatpush2.msra.mxu0 0.0
    %470 = vmatprep.subr.mxu0 0.0
    %471 = vmatpush2.msra.mxu0 0.0
    %472 = vmatprep.subr.mxu0 0.0
    %473 = vmatpush2.msra.mxu0 0.0
    %474 = vmatprep.subr.mxu0 0.0
    %475 = vmatpush2.msra.mxu0 0.0
    %476 = vmatprep.subr.mxu0 0.0
    %477 = vmatpush2.msra.mxu0 0.0
    %478 = vmatprep.subr.mxu0 0.0
    %479 = vmatpush2.msra.mxu0 0.0
    %480 = vmatprep.subr.mxu0 0.0
    %481 = vmatpush2.msra.mxu0 0.0
    %482 = vmatprep.subr.mxu0 0.0
    %483 = vmatpush2.msra.mxu0 0.0
    %484 = vmatprep.subr.mxu0 0.0
    %485 = vmatpush2.msra.mxu0 0.0
    %486 = vmatprep.mubr.f32.mxu0 0.0
    %487 = vmatmul.mubr.f32.gmra.mxu0 %v420
    %v488 = vpop.f32.mrf.mxu0
    %v489 = vadd.f32 0.0, %v488
    %v490 = vpop.f32.mrf.mxu0
    %491 = vdwg.mxu0
    %v492 = vadd.f32 %v415, %v29
    %v493 = vlog2.pop %v489
    %v494 = vmul.f32 %v493, 0.6931472
    %v495 = vadd.f32 %v492, %v494
    %v496 = vadd.f32 %v495, %v410
    %vm497 = vcmp.gt.f32.partialorder %v412, 0.0
    %v498 = vsel %vm497, 1, 0
    %499 = vset.pattern.permute.xlu0 0
    %500 = vperm.xlu0 %499, %v498
    %v501 = vpop.permute.xlu0 %500
    %vm502 = vcmp.eq.s32.totalorder %v501, 1
    %v503 = vsel %vm502, %v496, %v408
    %s504 = scalar_lea.vmem %s0, 4
    %v505 = vld [vmem:[%s504] sm:$0x3]
    %s506 = scalar_lea.vmem %s2, 4
    %v507 = vld [vmem:[%s506] sm:$0x3]
    %v508 = vsel %vm126, %v503, -inf
    %509 = vmax.xlane.f32.xlu0 %v508
    %v510 = vpop.xlane.xlu0 %509
    %v511 = vsub.f32 %v503, %v510
    %v512 = vmul.f32 %v511, 1.442695
    %v513 = vpow.pop %v512
    %v515 = vsel %vm319, %v513, 0
    %517 = vmatprep.subr.mxu0 0.0
    %518 = vmatpush1.msra.mxu0 0.0
    %519 = vmatprep.subr.mxu0 0.0
    %520 = vmatpush1.msra.mxu0 0.0
    %521 = vmatprep.subr.mxu0 0.0
    %522 = vmatpush1.msra.mxu0 0.0
    %523 = vmatprep.subr.mxu0 0.0
    %524 = vmatpush1.msra.mxu0 0.0
    %525 = vmatprep.subr.mxu0 0.0
    %526 = vmatpush1.msra.mxu0 0.0
    %527 = vmatprep.subr.mxu0 0.0
    %528 = vmatpush1.msra.mxu0 0.0
    %529 = vmatprep.subr.mxu0 0.0
    %530 = vmatpush1.msra.mxu0 0.0
    %531 = vmatprep.subr.mxu0 0.0
    %532 = vmatpush1.msra.mxu0 0.0
    %533 = vmatprep.subr.mxu0 0.0
    %534 = vmatpush1.msra.mxu0 0.0
    %535 = vmatprep.subr.mxu0 0.0
    %536 = vmatpush1.msra.mxu0 0.0
    %537 = vmatprep.subr.mxu0 0.0
    %538 = vmatpush1.msra.mxu0 0.0
    %539 = vmatprep.subr.mxu0 0.0
    %540 = vmatpush1.msra.mxu0 0.0
    %541 = vmatprep.subr.mxu0 0.0
    %542 = vmatpush1.msra.mxu0 0.0
    %543 = vmatprep.subr.mxu0 0.0
    %544 = vmatpush1.msra.mxu0 0.0
    %545 = vmatprep.subr.mxu0 0.0
    %546 = vmatpush1.msra.mxu0 0.0
    %547 = vmatprep.subr.mxu0 0.0
    %548 = vmatpush1.msra.mxu0 %v325
    %549 = vmatprep.subr.mxu0 0.0
    %550 = vmatpush2.msra.mxu0 0.0
    %551 = vmatprep.subr.mxu0 0.0
    %552 = vmatpush2.msra.mxu0 0.0
    %553 = vmatprep.subr.mxu0 0.0
    %554 = vmatpush2.msra.mxu0 0.0
    %555 = vmatprep.subr.mxu0 0.0
    %556 = vmatpush2.msra.mxu0 0.0
    %557 = vmatprep.subr.mxu0 0.0
    %558 = vmatpush2.msra.mxu0 0.0
    %559 = vmatprep.subr.mxu0 0.0
    %560 = vmatpush2.msra.mxu0 0.0
    %561 = vmatprep.subr.mxu0 0.0
    %562 = vmatpush2.msra.mxu0 0.0
    %563 = vmatprep.subr.mxu0 0.0
    %564 = vmatpush2.msra.mxu0 0.0
    %565 = vmatprep.subr.mxu0 0.0
    %566 = vmatpush2.msra.mxu0 0.0
    %567 = vmatprep.subr.mxu0 0.0
    %568 = vmatpush2.msra.mxu0 0.0
    %569 = vmatprep.subr.mxu0 0.0
    %570 = vmatpush2.msra.mxu0 0.0
    %571 = vmatprep.subr.mxu0 0.0
    %572 = vmatpush2.msra.mxu0 0.0
    %573 = vmatprep.subr.mxu0 0.0
    %574 = vmatpush2.msra.mxu0 0.0
    %575 = vmatprep.subr.mxu0 0.0
    %576 = vmatpush2.msra.mxu0 0.0
    %577 = vmatprep.subr.mxu0 0.0
    %578 = vmatpush2.msra.mxu0 0.0
    %579 = vmatprep.subr.mxu0 0.0
    %580 = vmatpush2.msra.mxu0 0.0
    %581 = vmatprep.mubr.f32.mxu0 0.0
    %582 = vmatmul.mubr.f32.gmra.mxu0 %v515
    %v583 = vpop.f32.mrf.mxu0
    %v584 = vadd.f32 0.0, %v583
    %v585 = vpop.f32.mrf.mxu0
    %586 = vdwg.mxu0
    %v587 = vadd.f32 %v510, %v29
    %v588 = vlog2.pop %v584
    %v589 = vmul.f32 %v588, 0.6931472
    %v590 = vadd.f32 %v587, %v589
    %v591 = vadd.f32 %v590, %v505
    %vm592 = vcmp.gt.f32.partialorder %v507, 0.0
    %v593 = vsel %vm592, 1, 0
    %594 = vset.pattern.permute.xlu0 0
    %595 = vperm.xlu0 %594, %v593
    %v596 = vpop.permute.xlu0 %595
    %vm597 = vcmp.eq.s32.totalorder %v596, 1
    %v598 = vsel %vm597, %v591, %v503
    %s599 = scalar_lea.vmem %s0, 6
    %v600 = vld [vmem:[%s599] sm:$0x3]
    %s601 = scalar_lea.vmem %s2, 6
    %v602 = vld [vmem:[%s601] sm:$0x3]
    %v603 = vsel %vm126, %v598, -inf
    %604 = vmax.xlane.f32.xlu0 %v603
    %v605 = vpop.xlane.xlu0 %604
    %v606 = vsub.f32 %v598, %v605
    %v607 = vmul.f32 %v606, 1.442695
    %v608 = vpow.pop %v607
    %v610 = vsel %vm319, %v608, 0
    %612 = vmatprep.subr.mxu0 0.0
    %613 = vmatpush1.msra.mxu0 0.0
    %614 = vmatprep.subr.mxu0 0.0
    %615 = vmatpush1.msra.mxu0 0.0
    %616 = vmatprep.subr.mxu0 0.0
    %617 = vmatpush1.msra.mxu0 0.0
    %618 = vmatprep.subr.mxu0 0.0
    %619 = vmatpush1.msra.mxu0 0.0
    %620 = vmatprep.subr.mxu0 0.0
    %621 = vmatpush1.msra.mxu0 0.0
    %622 = vmatprep.subr.mxu0 0.0
    %623 = vmatpush1.msra.mxu0 0.0
    %624 = vmatprep.subr.mxu0 0.0
    %625 = vmatpush1.msra.mxu0 0.0
    %626 = vmatprep.subr.mxu0 0.0
    %627 = vmatpush1.msra.mxu0 0.0
    %628 = vmatprep.subr.mxu0 0.0
    %629 = vmatpush1.msra.mxu0 0.0
    %630 = vmatprep.subr.mxu0 0.0
    %631 = vmatpush1.msra.mxu0 0.0
    %632 = vmatprep.subr.mxu0 0.0
    %633 = vmatpush1.msra.mxu0 0.0
    %634 = vmatprep.subr.mxu0 0.0
    %635 = vmatpush1.msra.mxu0 0.0
    %636 = vmatprep.subr.mxu0 0.0
    %637 = vmatpush1.msra.mxu0 0.0
    %638 = vmatprep.subr.mxu0 0.0
    %639 = vmatpush1.msra.mxu0 0.0
    %640 = vmatprep.subr.mxu0 0.0
    %641 = vmatpush1.msra.mxu0 0.0
    %642 = vmatprep.subr.mxu0 0.0
    %643 = vmatpush1.msra.mxu0 %v325
    %644 = vmatprep.subr.mxu0 0.0
    %645 = vmatpush2.msra.mxu0 0.0
    %646 = vmatprep.subr.mxu0 0.0
    %647 = vmatpush2.msra.mxu0 0.0
    %648 = vmatprep.subr.mxu0 0.0
    %649 = vmatpush2.msra.mxu0 0.0
    %650 = vmatprep.subr.mxu0 0.0
    %651 = vmatpush2.msra.mxu0 0.0
    %652 = vmatprep.subr.mxu0 0.0
    %653 = vmatpush2.msra.mxu0 0.0
    %654 = vmatprep.subr.mxu0 0.0
    %655 = vmatpush2.msra.mxu0 0.0
    %656 = vmatprep.subr.mxu0 0.0
    %657 = vmatpush2.msra.mxu0 0.0
    %658 = vmatprep.subr.mxu0 0.0
    %659 = vmatpush2.msra.mxu0 0.0
    %660 = vmatprep.subr.mxu0 0.0
    %661 = vmatpush2.msra.mxu0 0.0
    %662 = vmatprep.subr.mxu0 0.0
    %663 = vmatpush2.msra.mxu0 0.0
    %664 = vmatprep.subr.mxu0 0.0
    %665 = vmatpush2.msra.mxu0 0.0
    %666 = vmatprep.subr.mxu0 0.0
    %667 = vmatpush2.msra.mxu0 0.0
    %668 = vmatprep.subr.mxu0 0.0
    %669 = vmatpush2.msra.mxu0 0.0
    %670 = vmatprep.subr.mxu0 0.0
    %671 = vmatpush2.msra.mxu0 0.0
    %672 = vmatprep.subr.mxu0 0.0
    %673 = vmatpush2.msra.mxu0 0.0
    %674 = vmatprep.subr.mxu0 0.0
    %675 = vmatpush2.msra.mxu0 0.0
    %676 = vmatprep.mubr.f32.mxu0 0.0
    %677 = vmatmul.mubr.f32.gmra.mxu0 %v610
    %v678 = vpop.f32.mrf.mxu0
    %v679 = vadd.f32 0.0, %v678
    %v680 = vpop.f32.mrf.mxu0
    %681 = vdwg.mxu0
    %v682 = vadd.f32 %v605, %v29
    %v683 = vlog2.pop %v679
    %v684 = vmul.f32 %v683, 0.6931472
    %v685 = vadd.f32 %v682, %v684
    %v686 = vadd.f32 %v685, %v600
    %vm687 = vcmp.gt.f32.partialorder %v602, 0.0
    %v688 = vsel %vm687, 1, 0
    %689 = vset.pattern.permute.xlu0 0
    %690 = vperm.xlu0 %689, %v688
    %v691 = vpop.permute.xlu0 %690
    %vm692 = vcmp.eq.s32.totalorder %v691, 1
    %v693 = vsel %vm692, %v686, %v598
    %s694 = scalar_lea.vmem %s0, 8
    %v695 = vld [vmem:[%s694] sm:$0x3]
    %s696 = scalar_lea.vmem %s2, 8
    %v697 = vld [vmem:[%s696] sm:$0x3]
    %v698 = vsel %vm126, %v693, -inf
    %699 = vmax.xlane.f32.xlu0 %v698
    %v700 = vpop.xlane.xlu0 %699
    %v701 = vsub.f32 %v693, %v700
    %v702 = vmul.f32 %v701, 1.442695
    %v703 = vpow.pop %v702
    %v705 = vsel %vm319, %v703, 0
    %707 = vmatprep.subr.mxu0 0.0
    %708 = vmatpush1.msra.mxu0 0.0
    %709 = vmatprep.subr.mxu0 0.0
    %710 = vmatpush1.msra.mxu0 0.0
    %711 = vmatprep.subr.mxu0 0.0
    %712 = vmatpush1.msra.mxu0 0.0
    %713 = vmatprep.subr.mxu0 0.0
    %714 = vmatpush1.msra.mxu0 0.0
    %715 = vmatprep.subr.mxu0 0.0
    %716 = vmatpush1.msra.mxu0 0.0
    %717 = vmatprep.subr.mxu0 0.0
    %718 = vmatpush1.msra.mxu0 0.0
    %719 = vmatprep.subr.mxu0 0.0
    %720 = vmatpush1.msra.mxu0 0.0
    %721 = vmatprep.subr.mxu0 0.0
    %722 = vmatpush1.msra.mxu0 0.0
    %723 = vmatprep.subr.mxu0 0.0
    %724 = vmatpush1.msra.mxu0 0.0
    %725 = vmatprep.subr.mxu0 0.0
    %726 = vmatpush1.msra.mxu0 0.0
    %727 = vmatprep.subr.mxu0 0.0
    %728 = vmatpush1.msra.mxu0 0.0
    %729 = vmatprep.subr.mxu0 0.0
    %730 = vmatpush1.msra.mxu0 0.0
    %731 = vmatprep.subr.mxu0 0.0
    %732 = vmatpush1.msra.mxu0 0.0
    %733 = vmatprep.subr.mxu0 0.0
    %734 = vmatpush1.msra.mxu0 0.0
    %735 = vmatprep.subr.mxu0 0.0
    %736 = vmatpush1.msra.mxu0 0.0
    %737 = vmatprep.subr.mxu0 0.0
    %738 = vmatpush1.msra.mxu0 %v325
    %739 = vmatprep.subr.mxu0 0.0
    %740 = vmatpush2.msra.mxu0 0.0
    %741 = vmatprep.subr.mxu0 0.0
    %742 = vmatpush2.msra.mxu0 0.0
    %743 = vmatprep.subr.mxu0 0.0
    %744 = vmatpush2.msra.mxu0 0.0
    %745 = vmatprep.subr.mxu0 0.0
    %746 = vmatpush2.msra.mxu0 0.0
    %747 = vmatprep.subr.mxu0 0.0
    %748 = vmatpush2.msra.mxu0 0.0
    %749 = vmatprep.subr.mxu0 0.0
    %750 = vmatpush2.msra.mxu0 0.0
    %751 = vmatprep.subr.mxu0 0.0
    %752 = vmatpush2.msra.mxu0 0.0
    %753 = vmatprep.subr.mxu0 0.0
    %754 = vmatpush2.msra.mxu0 0.0
    %755 = vmatprep.subr.mxu0 0.0
    %756 = vmatpush2.msra.mxu0 0.0
    %757 = vmatprep.subr.mxu0 0.0
    %758 = vmatpush2.msra.mxu0 0.0
    %759 = vmatprep.subr.mxu0 0.0
    %760 = vmatpush2.msra.mxu0 0.0
    %761 = vmatprep.subr.mxu0 0.0
    %762 = vmatpush2.msra.mxu0 0.0
    %763 = vmatprep.subr.mxu0 0.0
    %764 = vmatpush2.msra.mxu0 0.0
    %765 = vmatprep.subr.mxu0 0.0
    %766 = vmatpush2.msra.mxu0 0.0
    %767 = vmatprep.subr.mxu0 0.0
    %768 = vmatpush2.msra.mxu0 0.0
    %769 = vmatprep.subr.mxu0 0.0
    %770 = vmatpush2.msra.mxu0 0.0
    %771 = vmatprep.mubr.f32.mxu0 0.0
    %772 = vmatmul.mubr.f32.gmra.mxu0 %v705
    %v773 = vpop.f32.mrf.mxu0
    %v774 = vadd.f32 0.0, %v773
    %v775 = vpop.f32.mrf.mxu0
    %776 = vdwg.mxu0
    %v777 = vadd.f32 %v700, %v29
    %v778 = vlog2.pop %v774
    %v779 = vmul.f32 %v778, 0.6931472
    %v780 = vadd.f32 %v777, %v779
    %v781 = vadd.f32 %v780, %v695
    %vm782 = vcmp.gt.f32.partialorder %v697, 0.0
    %v783 = vsel %vm782, 1, 0
    %784 = vset.pattern.permute.xlu0 0
    %785 = vperm.xlu0 %784, %v783
    %v786 = vpop.permute.xlu0 %785
    %vm787 = vcmp.eq.s32.totalorder %v786, 1
    %v788 = vsel %vm787, %v781, %v693
    %s789 = scalar_lea.vmem %s0, 10
    %v790 = vld [vmem:[%s789] sm:$0x3]
    %s791 = scalar_lea.vmem %s2, 10
    %v792 = vld [vmem:[%s791] sm:$0x3]
    %v793 = vsel %vm126, %v788, -inf
    %794 = vmax.xlane.f32.xlu0 %v793
    %v795 = vpop.xlane.xlu0 %794
    %v796 = vsub.f32 %v788, %v795
    %v797 = vmul.f32 %v796, 1.442695
    %v798 = vpow.pop %v797
    %v800 = vsel %vm319, %v798, 0
    %802 = vmatprep.subr.mxu0 0.0
    %803 = vmatpush1.msra.mxu0 0.0
    %804 = vmatprep.subr.mxu0 0.0
    %805 = vmatpush1.msra.mxu0 0.0
    %806 = vmatprep.subr.mxu0 0.0
    %807 = vmatpush1.msra.mxu0 0.0
    %808 = vmatprep.subr.mxu0 0.0
    %809 = vmatpush1.msra.mxu0 0.0
    %810 = vmatprep.subr.mxu0 0.0
    %811 = vmatpush1.msra.mxu0 0.0
    %812 = vmatprep.subr.mxu0 0.0
    %813 = vmatpush1.msra.mxu0 0.0
    %814 = vmatprep.subr.mxu0 0.0
    %815 = vmatpush1.msra.mxu0 0.0
    %816 = vmatprep.subr.mxu0 0.0
    %817 = vmatpush1.msra.mxu0 0.0
    %818 = vmatprep.subr.mxu0 0.0
    %819 = vmatpush1.msra.mxu0 0.0
    %820 = vmatprep.subr.mxu0 0.0
    %821 = vmatpush1.msra.mxu0 0.0
    %822 = vmatprep.subr.mxu0 0.0
    %823 = vmatpush1.msra.mxu0 0.0
    %824 = vmatprep.subr.mxu0 0.0
    %825 = vmatpush1.msra.mxu0 0.0
    %826 = vmatprep.subr.mxu0 0.0
    %827 = vmatpush1.msra.mxu0 0.0
    %828 = vmatprep.subr.mxu0 0.0
    %829 = vmatpush1.msra.mxu0 0.0
    %830 = vmatprep.subr.mxu0 0.0
    %831 = vmatpush1.msra.mxu0 0.0
    %832 = vmatprep.subr.mxu0 0.0
    %833 = vmatpush1.msra.mxu0 %v325
    %834 = vmatprep.subr.mxu0 0.0
    %835 = vmatpush2.msra.mxu0 0.0
    %836 = vmatprep.subr.mxu0 0.0
    %837 = vmatpush2.msra.mxu0 0.0
    %838 = vmatprep.subr.mxu0 0.0
    %839 = vmatpush2.msra.mxu0 0.0
    %840 = vmatprep.subr.mxu0 0.0
    %841 = vmatpush2.msra.mxu0 0.0
    %842 = vmatprep.subr.mxu0 0.0
    %843 = vmatpush2.msra.mxu0 0.0
    %844 = vmatprep.subr.mxu0 0.0
    %845 = vmatpush2.msra.mxu0 0.0
    %846 = vmatprep.subr.mxu0 0.0
    %847 = vmatpush2.msra.mxu0 0.0
    %848 = vmatprep.subr.mxu0 0.0
    %849 = vmatpush2.msra.mxu0 0.0
    %850 = vmatprep.subr.mxu0 0.0
    %851 = vmatpush2.msra.mxu0 0.0
    %852 = vmatprep.subr.mxu0 0.0
    %853 = vmatpush2.msra.mxu0 0.0
    %854 = vmatprep.subr.mxu0 0.0
    %855 = vmatpush2.msra.mxu0 0.0
    %856 = vmatprep.subr.mxu0 0.0
    %857 = vmatpush2.msra.mxu0 0.0
    %858 = vmatprep.subr.mxu0 0.0
    %859 = vmatpush2.msra.mxu0 0.0
    %860 = vmatprep.subr.mxu0 0.0
    %861 = vmatpush2.msra.mxu0 0.0
    %862 = vmatprep.subr.mxu0 0.0
    %863 = vmatpush2.msra.mxu0 0.0
    %864 = vmatprep.subr.mxu0 0.0
    %865 = vmatpush2.msra.mxu0 0.0
    %866 = vmatprep.mubr.f32.mxu0 0.0
    %867 = vmatmul.mubr.f32.gmra.mxu0 %v800
    %v868 = vpop.f32.mrf.mxu0
    %v869 = vadd.f32 0.0, %v868
    %v870 = vpop.f32.mrf.mxu0
    %871 = vdwg.mxu0
    %v872 = vadd.f32 %v795, %v29
    %v873 = vlog2.pop %v869
    %v874 = vmul.f32 %v873, 0.6931472
    %v875 = vadd.f32 %v872, %v874
    %v876 = vadd.f32 %v875, %v790
    %vm877 = vcmp.gt.f32.partialorder %v792, 0.0
    %v878 = vsel %vm877, 1, 0
    %879 = vset.pattern.permute.xlu0 0
    %880 = vperm.xlu0 %879, %v878
    %v881 = vpop.permute.xlu0 %880
    %vm882 = vcmp.eq.s32.totalorder %v881, 1
    %v883 = vsel %vm882, %v876, %v788
    %s884 = scalar_lea.vmem %s0, 12
    %v885 = vld [vmem:[%s884] sm:$0x3]
    %s886 = scalar_lea.vmem %s2, 12
    %v887 = vld [vmem:[%s886] sm:$0x3]
    %v888 = vsel %vm126, %v883, -inf
    %889 = vmax.xlane.f32.xlu0 %v888
    %v890 = vpop.xlane.xlu0 %889
    %v891 = vsub.f32 %v883, %v890
    %v892 = vmul.f32 %v891, 1.442695
    %v893 = vpow.pop %v892
    %v895 = vsel %vm319, %v893, 0
    %897 = vmatprep.subr.mxu0 0.0
    %898 = vmatpush1.msra.mxu0 0.0
    %899 = vmatprep.subr.mxu0 0.0
    %900 = vmatpush1.msra.mxu0 0.0
    %901 = vmatprep.subr.mxu0 0.0
    %902 = vmatpush1.msra.mxu0 0.0
    %903 = vmatprep.subr.mxu0 0.0
    %904 = vmatpush1.msra.mxu0 0.0
    %905 = vmatprep.subr.mxu0 0.0
    %906 = vmatpush1.msra.mxu0 0.0
    %907 = vmatprep.subr.mxu0 0.0
    %908 = vmatpush1.msra.mxu0 0.0
    %909 = vmatprep.subr.mxu0 0.0
    %910 = vmatpush1.msra.mxu0 0.0
    %911 = vmatprep.subr.mxu0 0.0
    %912 = vmatpush1.msra.mxu0 0.0
    %913 = vmatprep.subr.mxu0 0.0
    %914 = vmatpush1.msra.mxu0 0.0
    %915 = vmatprep.subr.mxu0 0.0
    %916 = vmatpush1.msra.mxu0 0.0
    %917 = vmatprep.subr.mxu0 0.0
    %918 = vmatpush1.msra.mxu0 0.0
    %919 = vmatprep.subr.mxu0 0.0
    %920 = vmatpush1.msra.mxu0 0.0
    %921 = vmatprep.subr.mxu0 0.0
    %922 = vmatpush1.msra.mxu0 0.0
    %923 = vmatprep.subr.mxu0 0.0
    %924 = vmatpush1.msra.mxu0 0.0
    %925 = vmatprep.subr.mxu0 0.0
    %926 = vmatpush1.msra.mxu0 0.0
    %927 = vmatprep.subr.mxu0 0.0
    %928 = vmatpush1.msra.mxu0 %v325
    %929 = vmatprep.subr.mxu0 0.0
    %930 = vmatpush2.msra.mxu0 0.0
    %931 = vmatprep.subr.mxu0 0.0
    %932 = vmatpush2.msra.mxu0 0.0
    %933 = vmatprep.subr.mxu0 0.0
    %934 = vmatpush2.msra.mxu0 0.0
    %935 = vmatprep.subr.mxu0 0.0
    %936 = vmatpush2.msra.mxu0 0.0
    %937 = vmatprep.subr.mxu0 0.0
    %938 = vmatpush2.msra.mxu0 0.0
    %939 = vmatprep.subr.mxu0 0.0
    %940 = vmatpush2.msra.mxu0 0.0
    %941 = vmatprep.subr.mxu0 0.0
    %942 = vmatpush2.msra.mxu0 0.0
    %943 = vmatprep.subr.mxu0 0.0
    %944 = vmatpush2.msra.mxu0 0.0
    %945 = vmatprep.subr.mxu0 0.0
    %946 = vmatpush2.msra.mxu0 0.0
    %947 = vmatprep.subr.mxu0 0.0
    %948 = vmatpush2.msra.mxu0 0.0
    %949 = vmatprep.subr.mxu0 0.0
    %950 = vmatpush2.msra.mxu0 0.0
    %951 = vmatprep.subr.mxu0 0.0
    %952 = vmatpush2.msra.mxu0 0.0
    %953 = vmatprep.subr.mxu0 0.0
    %954 = vmatpush2.msra.mxu0 0.0
    %955 = vmatprep.subr.mxu0 0.0
    %956 = vmatpush2.msra.mxu0 0.0
    %957 = vmatprep.subr.mxu0 0.0
    %958 = vmatpush2.msra.mxu0 0.0
    %959 = vmatprep.subr.mxu0 0.0
    %960 = vmatpush2.msra.mxu0 0.0
    %961 = vmatprep.mubr.f32.mxu0 0.0
    %962 = vmatmul.mubr.f32.gmra.mxu0 %v895
    %v963 = vpop.f32.mrf.mxu0
    %v964 = vadd.f32 0.0, %v963
    %v965 = vpop.f32.mrf.mxu0
    %966 = vdwg.mxu0
    %v967 = vadd.f32 %v890, %v29
    %v968 = vlog2.pop %v964
    %v969 = vmul.f32 %v968, 0.6931472
    %v970 = vadd.f32 %v967, %v969
    %v971 = vadd.f32 %v970, %v885
    %vm972 = vcmp.gt.f32.partialorder %v887, 0.0
    %v973 = vsel %vm972, 1, 0
    %974 = vset.pattern.permute.xlu0 0
    %975 = vperm.xlu0 %974, %v973
    %v976 = vpop.permute.xlu0 %975
    %vm977 = vcmp.eq.s32.totalorder %v976, 1
    %v978 = vsel %vm977, %v971, %v883
    %s979 = scalar_lea.vmem %s0, 14
    %v980 = vld [vmem:[%s979] sm:$0x3]
    %s981 = scalar_lea.vmem %s2, 14
    %v982 = vld [vmem:[%s981] sm:$0x3]
    %v983 = vsel %vm126, %v978, -inf
    %984 = vmax.xlane.f32.xlu0 %v983
    %v985 = vpop.xlane.xlu0 %984
    %v986 = vsub.f32 %v978, %v985
    %v987 = vmul.f32 %v986, 1.442695
    %v988 = vpow.pop %v987
    %v990 = vsel %vm319, %v988, 0
    %992 = vmatprep.subr.mxu0 0.0
    %993 = vmatpush1.msra.mxu0 0.0
    %994 = vmatprep.subr.mxu0 0.0
    %995 = vmatpush1.msra.mxu0 0.0
    %996 = vmatprep.subr.mxu0 0.0
    %997 = vmatpush1.msra.mxu0 0.0
    %998 = vmatprep.subr.mxu0 0.0
    %999 = vmatpush1.msra.mxu0 0.0
    %1000 = vmatprep.subr.mxu0 0.0
    %1001 = vmatpush1.msra.mxu0 0.0
    %1002 = vmatprep.subr.mxu0 0.0
    %1003 = vmatpush1.msra.mxu0 0.0
    %1004 = vmatprep.subr.mxu0 0.0
    %1005 = vmatpush1.msra.mxu0 0.0
    %1006 = vmatprep.subr.mxu0 0.0
    %1007 = vmatpush1.msra.mxu0 0.0
    %1008 = vmatprep.subr.mxu0 0.0
    %1009 = vmatpush1.msra.mxu0 0.0
    %1010 = vmatprep.subr.mxu0 0.0
    %1011 = vmatpush1.msra.mxu0 0.0
    %1012 = vmatprep.subr.mxu0 0.0
    %1013 = vmatpush1.msra.mxu0 0.0
    %1014 = vmatprep.subr.mxu0 0.0
    %1015 = vmatpush1.msra.mxu0 0.0
    %1016 = vmatprep.subr.mxu0 0.0
    %1017 = vmatpush1.msra.mxu0 0.0
    %1018 = vmatprep.subr.mxu0 0.0
    %1019 = vmatpush1.msra.mxu0 0.0
    %1020 = vmatprep.subr.mxu0 0.0
    %1021 = vmatpush1.msra.mxu0 0.0
    %1022 = vmatprep.subr.mxu0 0.0
    %1023 = vmatpush1.msra.mxu0 %v325
    %1024 = vmatprep.subr.mxu0 0.0
    %1025 = vmatpush2.msra.mxu0 0.0
    %1026 = vmatprep.subr.mxu0 0.0
    %1027 = vmatpush2.msra.mxu0 0.0
    %1028 = vmatprep.subr.mxu0 0.0
    %1029 = vmatpush2.msra.mxu0 0.0
    %1030 = vmatprep.subr.mxu0 0.0
    %1031 = vmatpush2.msra.mxu0 0.0
    %1032 = vmatprep.subr.mxu0 0.0
    %1033 = vmatpush2.msra.mxu0 0.0
    %1034 = vmatprep.subr.mxu0 0.0
    %1035 = vmatpush2.msra.mxu0 0.0
    %1036 = vmatprep.subr.mxu0 0.0
    %1037 = vmatpush2.msra.mxu0 0.0
    %1038 = vmatprep.subr.mxu0 0.0
    %1039 = vmatpush2.msra.mxu0 0.0
    %1040 = vmatprep.subr.mxu0 0.0
    %1041 = vmatpush2.msra.mxu0 0.0
    %1042 = vmatprep.subr.mxu0 0.0
    %1043 = vmatpush2.msra.mxu0 0.0
    %1044 = vmatprep.subr.mxu0 0.0
    %1045 = vmatpush2.msra.mxu0 0.0
    %1046 = vmatprep.subr.mxu0 0.0
    %1047 = vmatpush2.msra.mxu0 0.0
    %1048 = vmatprep.subr.mxu0 0.0
    %1049 = vmatpush2.msra.mxu0 0.0
    %1050 = vmatprep.subr.mxu0 0.0
    %1051 = vmatpush2.msra.mxu0 0.0
    %1052 = vmatprep.subr.mxu0 0.0
    %1053 = vmatpush2.msra.mxu0 0.0
    %1054 = vmatprep.subr.mxu0 0.0
    %1055 = vmatpush2.msra.mxu0 0.0
    %1056 = vmatprep.mubr.f32.mxu0 0.0
    %1057 = vmatmul.mubr.f32.gmra.mxu0 %v990
    %v1058 = vpop.f32.mrf.mxu0
    %v1059 = vadd.f32 0.0, %v1058
    %v1060 = vpop.f32.mrf.mxu0
    %1061 = vdwg.mxu0
    %v1062 = vadd.f32 %v985, %v29
    %v1063 = vlog2.pop %v1059
    %v1064 = vmul.f32 %v1063, 0.6931472
    %v1065 = vadd.f32 %v1062, %v1064
    %v1066 = vadd.f32 %v1065, %v980
    %vm1067 = vcmp.gt.f32.partialorder %v982, 0.0
    %v1068 = vsel %vm1067, 1, 0
    %1069 = vset.pattern.permute.xlu0 0
    %1070 = vperm.xlu0 %1069, %v1068
    %v1071 = vpop.permute.xlu0 %1070
    %vm1072 = vcmp.eq.s32.totalorder %v1071, 1
    %v1073 = vsel %vm1072, %v1066, %v978
    %1074 = vst.msk [vmem:[#allocation2] sm:$0x3] %vm126, %v1073
    // Predicated region
    $region26: #{crf_forward.1} parent=1 // pred_check
      %p1075 = pneg %p34
    $region27: #{crf_forward.1} parent=1 // pred_check_branch
      %1077 = sbr.rel (%p1075) target = $region29
    $region28: #{crf_forward.1} parent=1 // pred_region
      %v1078 = vsel %vm126, %v1073, -inf
      %1079 = vmax.xlane.f32.xlu0 %v1078
      %v1080 = vpop.xlane.xlu0 %1079
      %v1081 = vsub.f32 %v1073, %v1080
      %v1082 = vmul.f32 %v1081, 1.442695
      %v1083 = vpow.pop %v1082
      %v1084 = vsel %vm126, %v1083, 0.0
      %1085 = vadd.xlane.f32.xlu0 %v1084
      %v1086 = vpop.xlane.xlu0 %1085
      %v1087 = vlog2.pop %v1086
      %v1088 = vmul.f32 %v1087, 0.6931472
      %v1089 = vadd.f32 %v1080, %v1088
      %v1090 = vld [vmem:[#allocation3] sm:$0x3]
      %v1091 = vsub.f32 %v1090, %v1089
      %v1092 = vsel %vm159, %v1091, 0.0
      %v1093 = vrot.slane %v1092, 4
      %v1094 = vadd.f32 %v1092, %v1093
      %v1095 = vrot.slane %v1094, 2
      %v1096 = vadd.f32 %v1094, %v1095
      %v1097 = vrot.slane %v1096, 1
      %v1098 = vadd.f32 %v1096, %v1097
      %vm1099 = vcmask 0
      %1100 = vst.msk [vmem:[#allocation5] sm:$0x1] %vm1099, %v1098
    $region29: #{crf_forward.1} parent=1 // pred_fallthru
      _
    // Predicated region
    $region30: #{crf_forward.1} parent=1 // pred_check
      _
    $region31: #{crf_forward.1} parent=1 // pred_check_branch
      %1102 = sbr.rel (0) target = $region33
    $region32: #{crf_forward.1} parent=1 // pred_region
      %s1104 = ssub.s32 16, 16
      %1105 = vsyncadd [#allocation6], %s1104
      %s1107 = sshll.u32 [#allocation5], 4
      %s1108 = int_to_ptr.vmem [resolvable:$true] %s1107
      %1110 = dma.vmem_to_hbm [thread:$0]  %s1108, 16, %s5, [#allocation6]
    $region33: #{crf_forward.1} parent=1 // pred_fallthru
      _
    // Predicated region
    $region34: #{crf_forward.1} parent=1 // pred_check
      _
    $region35: #{crf_forward.1} parent=1 // pred_check_branch
      %1112 = sbr.rel (0) target = $region37
    $region36: #{crf_forward.1} parent=1 // pred_region
      %1113 = dma.done [#allocation6], 16
    $region37: #{crf_forward.1} parent=1 // pred_fallthru
      _
    %1114 = vsyncpa [#allocation6], 1

</llo_original>
